<compile_context>
chip_gen: v7x
topology: tpu7x:2x2x1
jax: 0.10.0
libtpu: 0.0.40
codegen_flags: <defaults>
</compile_context>

<pallas_src>
from functools import partial

import jax
import jax.numpy as jnp
from jax.experimental import pallas as pl
from jax.experimental.pallas import tpu as pltpu

EPS = 1e-5


def _reflect_pad(img):
    # img: (B, Hp, Wp, C) -> (B, Hp+2, Wp+2, C); torch padding_mode='reflect', pad=1.
    top = img[:, 1:2]
    bot = img[:, -2:-1]
    rows = jnp.concatenate([top, img, bot], axis=1)          # (B, Hp+2, Wp, C)
    left = rows[:, :, 1:2]
    right = rows[:, :, -2:-1]
    return jnp.concatenate([left, rows, right], axis=2)      # (B, Hp+2, Wp+2, C)


def _conv3x3_in_relu(img, w, mm_dtype):
    # img: (B, Hp, Wp, Cin) f32, w: (9*Cin, Cout) already in mm_dtype
    # -> (B, Hp, Wp, Cout) f32
    B, Hp, Wp, Cin = img.shape
    Cout = w.shape[1]

    pad = _reflect_pad(img)                                  # (B, Hp+2, Wp+2, Cin)
    taps = [pad[:, ky:ky + Hp, kx:kx + Wp, :]
            for ky in range(3) for kx in range(3)]
    col = jnp.concatenate(taps, axis=-1)                     # (B, Hp, Wp, 9*Cin)
    col = col.reshape(B * Hp * Wp, 9 * Cin)

    # One MXU matmul per conv; f32 accumulation regardless of mm_dtype.
    y = jnp.dot(col.astype(mm_dtype), w,
                preferred_element_type=jnp.float32)          # (B*Hp*Wp, Cout)

    # InstanceNorm2d (no affine, biased var, eps=1e-5) per image + ReLU, f32.
    # One-pass statistics: reduce sum and sum-of-squares together,
    # var = E[x^2] - mean^2 (saves a full (y-mean)^2 elementwise pass).
    y = y.reshape(B, Hp * Wp, Cout)
    inv_n = 1.0 / (Hp * Wp)
    mean = jnp.sum(y, axis=1, keepdims=True) * inv_n
    msq = jnp.sum(y * y, axis=1, keepdims=True) * inv_n
    var = jnp.maximum(msq - mean * mean, 0.0)
    scale = jax.lax.rsqrt(var + EPS)                         # EUP
    y = jnp.maximum((y - mean) * scale, 0.0)
    return y.reshape(B, Hp, Wp, Cout)


def down_kernel(x4_ref, w1_ref, w2_ref, o_ref, *, mm_dtype):
    # x4_ref: (bb, 4, Hp, Wp, Cin) -- the 4 elements of each 2x2 pool window on axis 1
    # w1_ref: (9*Cin,  Cmid)  in mm_dtype (VMEM-resident across the grid)
    # w2_ref: (9*Cmid, Cout)  in mm_dtype (VMEM-resident across the grid)
    # o_ref : (bb, Hp*Wp*Cout)     -- lane-dense output slab
    bb, _, Hp, Wp, _ = x4_ref.shape
    Cout = w2_ref.shape[1]

    pooled = jnp.max(x4_ref[...], axis=1)                    # MaxPool2d(2)
    y1 = _conv3x3_in_relu(pooled, w1_ref[...], mm_dtype)     # conv1 + IN + ReLU
    y2 = _conv3x3_in_relu(y1, w2_ref[...], mm_dtype)         # conv2 + IN + ReLU
    o_ref[...] = y2.reshape(bb, Hp * Wp * Cout).astype(o_ref.dtype)


def _round_up(x, m):
    return -(-x // m) * m


def _pick_batch_block(N, Hp, Wp, Cin, Cmid, Cout, budget_bytes=12 << 20):
    """Largest divisor of N whose (lane-padded) working set fits the VMEM budget."""
    def est(bb):
        inp = 2 * bb * 4 * Hp * _round_up(Wp, 8) * _round_up(Cin, 128) * 4
        out = 2 * _round_up(bb, 8) * _round_up(Hp * Wp * Cout, 128) * 4
        work = bb * Hp * _round_up(Wp, 8) * (
            _round_up(9 * Cin, 128) + _round_up(9 * Cmid, 128)
            + _round_up(Cmid, 128) + _round_up(Cout, 128)) * 4
        return inp + out + work

    for bb in range(N, 0, -1):
        if N % bb == 0 and est(bb) <= budget_bytes:
            return bb
    return 1


def down_forward(x_nchw, w1_oihw, w2_oihw, mm_dtype=jnp.float32):
    """Down.forward: MaxPool2d(2) -> (Conv3x3 reflect -> InstanceNorm -> ReLU) x 2.

    x_nchw : (N, Cin, H, W) float32, H and W even and >= 4.
    w*_oihw: PyTorch Conv2d weights (OIHW, bias=False).
    mm_dtype: matmul input dtype; jnp.bfloat16 recommended on v6e/v7x when the
              accuracy budget allows (accumulation stays f32).
    """
    N, Cin, H, W = x_nchw.shape
    assert H % 2 == 0 and W % 2 == 0, "MaxPool2d(2) needs even H, W"
    assert H >= 4 and W >= 4, "reflect padding needs pooled H, W >= 2"
    Hp, Wp = H // 2, W // 2
    Cmid = w1_oihw.shape[0]
    Cout = w2_oihw.shape[0]

    # One HBM copy: NCHW -> (N, 4, Hp, Wp, Cin) with the 2x2 pool window on
    # axis 1.  Outer reshapes are free; the single 6-D transpose is the same
    # one copy the plain NCHW->NHWC conversion needs anyway.
    x4 = (x_nchw.astype(jnp.float32)
          .reshape(N, Cin, Hp, 2, Wp, 2)
          .transpose(0, 3, 5, 2, 4, 1)
          .reshape(N, 4, Hp, Wp, Cin))

    # OIHW -> (ky, kx, ci, co) -> (9*Cin, Cout): matches im2col lane order.
    # Cast once here so the kernel never re-casts weights per grid step.
    w1 = (jnp.transpose(w1_oihw, (2, 3, 1, 0))
          .reshape(9 * Cin, Cmid).astype(mm_dtype))
    w2 = (jnp.transpose(w2_oihw, (2, 3, 1, 0))
          .reshape(9 * Cmid, Cout).astype(mm_dtype))

    bb = _pick_batch_block(N, Hp, Wp, Cin, Cmid, Cout)

    out_flat = pl.pallas_call(
        partial(down_kernel, mm_dtype=mm_dtype),
        out_shape=jax.ShapeDtypeStruct((N, Hp * Wp * Cout), jnp.float32),
        grid_spec=pltpu.PrefetchScalarGridSpec(
            num_scalar_prefetch=0,
            grid=(N // bb,),
            in_specs=[
                pl.BlockSpec((bb, 4, Hp, Wp, Cin), lambda n: (n, 0, 0, 0, 0)),
                pl.BlockSpec((9 * Cin, Cmid), lambda n: (0, 0)),   # VMEM-resident
                pl.BlockSpec((9 * Cmid, Cout), lambda n: (0, 0)),  # VMEM-resident
            ],
            out_specs=pl.BlockSpec((bb, Hp * Wp * Cout), lambda n: (n, 0)),
        ),
        compiler_params=pltpu.CompilerParams(dimension_semantics=("parallel",)),
    )(x4, w1, w2)

    out = out_flat.reshape(N, Hp, Wp, Cout)
    return jnp.transpose(out, (0, 3, 1, 2))                   # (N, Cout, Hp, Wp)


def down_reference(x_nchw, w1_oihw, w2_oihw):
    """Pure-JAX reference (mirrors the PyTorch module) for verification."""
    p = jax.lax.reduce_window(x_nchw, -jnp.inf, jax.lax.max,
                              (1, 1, 2, 2), (1, 1, 2, 2), 'VALID')

    def block(x, w):
        xpad = jnp.pad(x, ((0, 0), (0, 0), (1, 1), (1, 1)), mode='reflect')
        y = jax.lax.conv_general_dilated(
            xpad, w, (1, 1), 'VALID',
            dimension_numbers=('NCHW', 'OIHW', 'NCHW'),
            precision=jax.lax.Precision.HIGHEST)
        mean = y.mean(axis=(2, 3), keepdims=True)
        var = ((y - mean) ** 2).mean(axis=(2, 3), keepdims=True)
        return jnp.maximum((y - mean) * jax.lax.rsqrt(var + EPS), 0.0)

    return block(block(p, w1_oihw), w2_oihw)


if __name__ == "__main__":
    # Small shapes consistent with the module: Down(in_channels=4, out_channels=8)
    N, Cin, H, W = 2, 4, 16, 16
    Cout = 8
    Cmid = Cout  # DoubleConv default: mid_channels = out_channels

    key = jax.random.PRNGKey(0)
    kx, k1, k2 = jax.random.split(key, 3)
    x = jax.random.normal(kx, (N, Cin, H, W), dtype=jnp.float32)
    # Deterministic synthetic Conv2d weights (PyTorch OIHW layout, bias=False).
    w1 = 0.2 * jax.random.normal(k1, (Cmid, Cin, 3, 3), dtype=jnp.float32)
    w2 = 0.2 * jax.random.normal(k2, (Cout, Cmid, 3, 3), dtype=jnp.float32)

    out = down_forward(x, w1, w2)
    out = jax.block_until_ready(out)

    ref = jax.block_until_ready(down_reference(x, w1, w2))
    if out.shape != (N, Cout, H // 2, W // 2):
        raise AssertionError(f"bad output shape {out.shape}")
    if not jnp.allclose(out, ref, atol=2e-3, rtol=2e-3):
        raise AssertionError("Pallas kernel does not match JAX reference")

    print("KERNEL_OK")
</pallas_src>

<mosaic_0001>
module attributes {stable_mosaic.version = 11 : i64} {
  func.func @down_kernel(%arg0: i32, %arg1: memref<2x4x8x8x4xf32, #tpu.memory_space<vmem>>, %arg2: memref<36x8xf32, #tpu.memory_space<vmem>>, %arg3: memref<72x8xf32, #tpu.memory_space<vmem>>, %arg4: memref<2x512xf32, #tpu.memory_space<vmem>>) attributes {dimension_semantics = [#tpu.dimension_semantics<parallel>], iteration_bounds = array<i64: 1>, scalar_prefetch = 0 : i64, scratch_operands = 0 : i64, tpu.core_type = #tpu.core_type<tc>, window_params = [{transform_indices = @transform_0, window_bounds = array<i64: 2, 4, 8, 8, 4>}, {pipeline_mode = #tpu.pipeline_mode<synchronous>, transform_indices = @transform_1, window_bounds = array<i64: 36, 8>}, {pipeline_mode = #tpu.pipeline_mode<synchronous>, transform_indices = @transform_2, window_bounds = array<i64: 72, 8>}, {transform_indices = @transform_3, window_bounds = array<i64: 2, 512>}]} {
    %c0 = arith.constant 0 : index
    %c0_0 = arith.constant 0 : index
    %c0_1 = arith.constant 0 : index
    %c0_2 = arith.constant 0 : index
    %c0_3 = arith.constant 0 : index
    %0 = vector.load %arg1[%c0, %c0_0, %c0_1, %c0_2, %c0_3] : memref<2x4x8x8x4xf32, #tpu.memory_space<vmem>>, vector<2x4x8x8x4xf32>
    %cst = arith.constant dense<0xFF800000> : vector<2x8x8x4xf32>
    %1 = vector.multi_reduction <maximumf>, %0, %cst [1] : vector<2x4x8x8x4xf32> to vector<2x8x8x4xf32>
    %c0_4 = arith.constant 0 : index
    %c0_5 = arith.constant 0 : index
    %2 = vector.load %arg2[%c0_4, %c0_5] : memref<36x8xf32, #tpu.memory_space<vmem>>, vector<36x8xf32>
    %3 = vector.extract_strided_slice %1 {offsets = [0, 1, 0, 0], sizes = [2, 1, 8, 4], strides = [1, 1, 1, 1]} : vector<2x8x8x4xf32> to vector<2x1x8x4xf32>
    %4 = vector.extract_strided_slice %1 {offsets = [0, 6, 0, 0], sizes = [2, 1, 8, 4], strides = [1, 1, 1, 1]} : vector<2x8x8x4xf32> to vector<2x1x8x4xf32>
    %5 = tpu.concatenate %3, %1, %4 in 1 : vector<2x1x8x4xf32>, vector<2x8x8x4xf32>, vector<2x1x8x4xf32> -> vector<2x10x8x4xf32>
    %6 = vector.extract_strided_slice %5 {offsets = [0, 0, 1, 0], sizes = [2, 10, 1, 4], strides = [1, 1, 1, 1]} : vector<2x10x8x4xf32> to vector<2x10x1x4xf32>
    %7 = vector.extract_strided_slice %5 {offsets = [0, 0, 6, 0], sizes = [2, 10, 1, 4], strides = [1, 1, 1, 1]} : vector<2x10x8x4xf32> to vector<2x10x1x4xf32>
    %8 = tpu.concatenate %6, %5, %7 in 2 : vector<2x10x1x4xf32>, vector<2x10x8x4xf32>, vector<2x10x1x4xf32> -> vector<2x10x10x4xf32>
    %9 = vector.extract_strided_slice %8 {offsets = [0, 0, 0, 0], sizes = [2, 8, 8, 4], strides = [1, 1, 1, 1]} : vector<2x10x10x4xf32> to vector<2x8x8x4xf32>
    %10 = vector.extract_strided_slice %8 {offsets = [0, 0, 1, 0], sizes = [2, 8, 8, 4], strides = [1, 1, 1, 1]} : vector<2x10x10x4xf32> to vector<2x8x8x4xf32>
    %11 = vector.extract_strided_slice %8 {offsets = [0, 0, 2, 0], sizes = [2, 8, 8, 4], strides = [1, 1, 1, 1]} : vector<2x10x10x4xf32> to vector<2x8x8x4xf32>
    %12 = vector.extract_strided_slice %8 {offsets = [0, 1, 0, 0], sizes = [2, 8, 8, 4], strides = [1, 1, 1, 1]} : vector<2x10x10x4xf32> to vector<2x8x8x4xf32>
    %13 = vector.extract_strided_slice %8 {offsets = [0, 1, 1, 0], sizes = [2, 8, 8, 4], strides = [1, 1, 1, 1]} : vector<2x10x10x4xf32> to vector<2x8x8x4xf32>
    %14 = vector.extract_strided_slice %8 {offsets = [0, 1, 2, 0], sizes = [2, 8, 8, 4], strides = [1, 1, 1, 1]} : vector<2x10x10x4xf32> to vector<2x8x8x4xf32>
    %15 = vector.extract_strided_slice %8 {offsets = [0, 2, 0, 0], sizes = [2, 8, 8, 4], strides = [1, 1, 1, 1]} : vector<2x10x10x4xf32> to vector<2x8x8x4xf32>
    %16 = vector.extract_strided_slice %8 {offsets = [0, 2, 1, 0], sizes = [2, 8, 8, 4], strides = [1, 1, 1, 1]} : vector<2x10x10x4xf32> to vector<2x8x8x4xf32>
    %17 = vector.extract_strided_slice %8 {offsets = [0, 2, 2, 0], sizes = [2, 8, 8, 4], strides = [1, 1, 1, 1]} : vector<2x10x10x4xf32> to vector<2x8x8x4xf32>
    %18 = tpu.concatenate %9, %10, %11, %12, %13, %14, %15, %16, %17 in 3 : vector<2x8x8x4xf32>, vector<2x8x8x4xf32>, vector<2x8x8x4xf32>, vector<2x8x8x4xf32>, vector<2x8x8x4xf32>, vector<2x8x8x4xf32>, vector<2x8x8x4xf32>, vector<2x8x8x4xf32>, vector<2x8x8x4xf32> -> vector<2x8x8x36xf32>
    %19 = vector.shape_cast %18 : vector<2x8x8x36xf32> to vector<128x36xf32>
    %cst_6 = arith.constant dense<0.000000e+00> : vector<128x8xf32>
    %20 = tpu.matmul %19, %2, %cst_6 {dimension_numbers = #tpu.dot_dimension_numbers<[1], [0], [0], [1], [0, 0, 1, 1], [], []>} : vector<128x36xf32>, vector<36x8xf32>, vector<128x8xf32> -> vector<128x8xf32>
    %21 = vector.shape_cast %20 : vector<128x8xf32> to vector<2x64x8xf32>
    %cst_7 = arith.constant dense<0.000000e+00> : vector<2x8xf32>
    %22 = vector.multi_reduction <add>, %21, %cst_7 [1] : vector<2x64x8xf32> to vector<2x8xf32>
    %23 = vector.shape_cast %22 : vector<2x8xf32> to vector<2x1x8xf32>
    %cst_8 = arith.constant 1.562500e-02 : f32
    %24 = vector.broadcast %cst_8 : f32 to vector<2x1x8xf32>
    %25 = arith.mulf %23, %24 : vector<2x1x8xf32>
    %26 = arith.mulf %21, %21 : vector<2x64x8xf32>
    %cst_9 = arith.constant dense<0.000000e+00> : vector<2x8xf32>
    %27 = vector.multi_reduction <add>, %26, %cst_9 [1] : vector<2x64x8xf32> to vector<2x8xf32>
    %28 = vector.shape_cast %27 : vector<2x8xf32> to vector<2x1x8xf32>
    %cst_10 = arith.constant 1.562500e-02 : f32
    %29 = vector.broadcast %cst_10 : f32 to vector<2x1x8xf32>
    %30 = arith.mulf %28, %29 : vector<2x1x8xf32>
    %31 = arith.mulf %25, %25 : vector<2x1x8xf32>
    %32 = arith.subf %30, %31 : vector<2x1x8xf32>
    %cst_11 = arith.constant 0.000000e+00 : f32
    %33 = vector.broadcast %cst_11 : f32 to vector<2x1x8xf32>
    %34 = arith.maximumf %32, %33 : vector<2x1x8xf32>
    %cst_12 = arith.constant 9.99999974E-6 : f32
    %35 = vector.broadcast %cst_12 : f32 to vector<2x1x8xf32>
    %36 = arith.addf %34, %35 : vector<2x1x8xf32>
    %37 = math.rsqrt %36 : vector<2x1x8xf32>
    %38 = vector.broadcast %25 : vector<2x1x8xf32> to vector<2x64x8xf32>
    %39 = arith.subf %21, %38 : vector<2x64x8xf32>
    %40 = vector.broadcast %37 : vector<2x1x8xf32> to vector<2x64x8xf32>
    %41 = arith.mulf %39, %40 : vector<2x64x8xf32>
    %cst_13 = arith.constant 0.000000e+00 : f32
    %42 = vector.broadcast %cst_13 : f32 to vector<2x64x8xf32>
    %43 = arith.maximumf %41, %42 : vector<2x64x8xf32>
    %44 = vector.shape_cast %43 : vector<2x64x8xf32> to vector<2x8x8x8xf32>
    %c0_14 = arith.constant 0 : index
    %c0_15 = arith.constant 0 : index
    %45 = vector.load %arg3[%c0_14, %c0_15] : memref<72x8xf32, #tpu.memory_space<vmem>>, vector<72x8xf32>
    %46 = vector.extract_strided_slice %44 {offsets = [0, 1, 0, 0], sizes = [2, 1, 8, 8], strides = [1, 1, 1, 1]} : vector<2x8x8x8xf32> to vector<2x1x8x8xf32>
    %47 = vector.extract_strided_slice %44 {offsets = [0, 6, 0, 0], sizes = [2, 1, 8, 8], strides = [1, 1, 1, 1]} : vector<2x8x8x8xf32> to vector<2x1x8x8xf32>
    %48 = tpu.concatenate %46, %44, %47 in 1 : vector<2x1x8x8xf32>, vector<2x8x8x8xf32>, vector<2x1x8x8xf32> -> vector<2x10x8x8xf32>
    %49 = vector.extract_strided_slice %48 {offsets = [0, 0, 1, 0], sizes = [2, 10, 1, 8], strides = [1, 1, 1, 1]} : vector<2x10x8x8xf32> to vector<2x10x1x8xf32>
    %50 = vector.extract_strided_slice %48 {offsets = [0, 0, 6, 0], sizes = [2, 10, 1, 8], strides = [1, 1, 1, 1]} : vector<2x10x8x8xf32> to vector<2x10x1x8xf32>
    %51 = tpu.concatenate %49, %48, %50 in 2 : vector<2x10x1x8xf32>, vector<2x10x8x8xf32>, vector<2x10x1x8xf32> -> vector<2x10x10x8xf32>
    %52 = vector.extract_strided_slice %51 {offsets = [0, 0, 0, 0], sizes = [2, 8, 8, 8], strides = [1, 1, 1, 1]} : vector<2x10x10x8xf32> to vector<2x8x8x8xf32>
    %53 = vector.extract_strided_slice %51 {offsets = [0, 0, 1, 0], sizes = [2, 8, 8, 8], strides = [1, 1, 1, 1]} : vector<2x10x10x8xf32> to vector<2x8x8x8xf32>
    %54 = vector.extract_strided_slice %51 {offsets = [0, 0, 2, 0], sizes = [2, 8, 8, 8], strides = [1, 1, 1, 1]} : vector<2x10x10x8xf32> to vector<2x8x8x8xf32>
    %55 = vector.extract_strided_slice %51 {offsets = [0, 1, 0, 0], sizes = [2, 8, 8, 8], strides = [1, 1, 1, 1]} : vector<2x10x10x8xf32> to vector<2x8x8x8xf32>
    %56 = vector.extract_strided_slice %51 {offsets = [0, 1, 1, 0], sizes = [2, 8, 8, 8], strides = [1, 1, 1, 1]} : vector<2x10x10x8xf32> to vector<2x8x8x8xf32>
    %57 = vector.extract_strided_slice %51 {offsets = [0, 1, 2, 0], sizes = [2, 8, 8, 8], strides = [1, 1, 1, 1]} : vector<2x10x10x8xf32> to vector<2x8x8x8xf32>
    %58 = vector.extract_strided_slice %51 {offsets = [0, 2, 0, 0], sizes = [2, 8, 8, 8], strides = [1, 1, 1, 1]} : vector<2x10x10x8xf32> to vector<2x8x8x8xf32>
    %59 = vector.extract_strided_slice %51 {offsets = [0, 2, 1, 0], sizes = [2, 8, 8, 8], strides = [1, 1, 1, 1]} : vector<2x10x10x8xf32> to vector<2x8x8x8xf32>
    %60 = vector.extract_strided_slice %51 {offsets = [0, 2, 2, 0], sizes = [2, 8, 8, 8], strides = [1, 1, 1, 1]} : vector<2x10x10x8xf32> to vector<2x8x8x8xf32>
    %61 = tpu.concatenate %52, %53, %54, %55, %56, %57, %58, %59, %60 in 3 : vector<2x8x8x8xf32>, vector<2x8x8x8xf32>, vector<2x8x8x8xf32>, vector<2x8x8x8xf32>, vector<2x8x8x8xf32>, vector<2x8x8x8xf32>, vector<2x8x8x8xf32>, vector<2x8x8x8xf32>, vector<2x8x8x8xf32> -> vector<2x8x8x72xf32>
    %62 = vector.shape_cast %61 : vector<2x8x8x72xf32> to vector<128x72xf32>
    %cst_16 = arith.constant dense<0.000000e+00> : vector<128x8xf32>
    %63 = tpu.matmul %62, %45, %cst_16 {dimension_numbers = #tpu.dot_dimension_numbers<[1], [0], [0], [1], [0, 0, 1, 1], [], []>} : vector<128x72xf32>, vector<72x8xf32>, vector<128x8xf32> -> vector<128x8xf32>
    %64 = vector.shape_cast %63 : vector<128x8xf32> to vector<2x64x8xf32>
    %cst_17 = arith.constant dense<0.000000e+00> : vector<2x8xf32>
    %65 = vector.multi_reduction <add>, %64, %cst_17 [1] : vector<2x64x8xf32> to vector<2x8xf32>
    %66 = vector.shape_cast %65 : vector<2x8xf32> to vector<2x1x8xf32>
    %cst_18 = arith.constant 1.562500e-02 : f32
    %67 = vector.broadcast %cst_18 : f32 to vector<2x1x8xf32>
    %68 = arith.mulf %66, %67 : vector<2x1x8xf32>
    %69 = arith.mulf %64, %64 : vector<2x64x8xf32>
    %cst_19 = arith.constant dense<0.000000e+00> : vector<2x8xf32>
    %70 = vector.multi_reduction <add>, %69, %cst_19 [1] : vector<2x64x8xf32> to vector<2x8xf32>
    %71 = vector.shape_cast %70 : vector<2x8xf32> to vector<2x1x8xf32>
    %cst_20 = arith.constant 1.562500e-02 : f32
    %72 = vector.broadcast %cst_20 : f32 to vector<2x1x8xf32>
    %73 = arith.mulf %71, %72 : vector<2x1x8xf32>
    %74 = arith.mulf %68, %68 : vector<2x1x8xf32>
    %75 = arith.subf %73, %74 : vector<2x1x8xf32>
    %cst_21 = arith.constant 0.000000e+00 : f32
    %76 = vector.broadcast %cst_21 : f32 to vector<2x1x8xf32>
    %77 = arith.maximumf %75, %76 : vector<2x1x8xf32>
    %cst_22 = arith.constant 9.99999974E-6 : f32
    %78 = vector.broadcast %cst_22 : f32 to vector<2x1x8xf32>
    %79 = arith.addf %77, %78 : vector<2x1x8xf32>
    %80 = math.rsqrt %79 : vector<2x1x8xf32>
    %81 = vector.broadcast %68 : vector<2x1x8xf32> to vector<2x64x8xf32>
    %82 = arith.subf %64, %81 : vector<2x64x8xf32>
    %83 = vector.broadcast %80 : vector<2x1x8xf32> to vector<2x64x8xf32>
    %84 = arith.mulf %82, %83 : vector<2x64x8xf32>
    %cst_23 = arith.constant 0.000000e+00 : f32
    %85 = vector.broadcast %cst_23 : f32 to vector<2x64x8xf32>
    %86 = arith.maximumf %84, %85 : vector<2x64x8xf32>
    %87 = vector.shape_cast %86 : vector<2x64x8xf32> to vector<2x8x8x8xf32>
    %88 = vector.shape_cast %87 : vector<2x8x8x8xf32> to vector<2x512xf32>
    %c0_24 = arith.constant 0 : index
    %c0_25 = arith.constant 0 : index
    %89 = vector.load %arg4[%c0_24, %c0_25] : memref<2x512xf32, #tpu.memory_space<vmem>>, vector<2x512xf32>
    tpu.vector_store %arg4[%c0_24, %c0_25], %88 {strides = array<i32>} : memref<2x512xf32, #tpu.memory_space<vmem>>, vector<2x512xf32>,
    return
  }
  func.func @transform_0(%arg0: i32) -> (i32, i32, i32, i32, i32) {
    %c0_i32 = arith.constant 0 : i32
    %c0_i32_0 = arith.constant 0 : i32
    %c0_i32_1 = arith.constant 0 : i32
    %c0_i32_2 = arith.constant 0 : i32
    %c0_i32_3 = arith.constant 0 : i32
    return %arg0, %c0_i32, %c0_i32_0, %c0_i32_1, %c0_i32_2 : i32, i32, i32, i32, i32
  }
  func.func @transform_1(%arg0: i32) -> (i32, i32) {
    %c0_i32 = arith.constant 0 : i32
    %c0_i32_0 = arith.constant 0 : i32
    %c0_i32_1 = arith.constant 0 : i32
    return %c0_i32, %c0_i32_0 : i32, i32
  }
  func.func @transform_2(%arg0: i32) -> (i32, i32) {
    %c0_i32 = arith.constant 0 : i32
    %c0_i32_0 = arith.constant 0 : i32
    %c0_i32_1 = arith.constant 0 : i32
    return %c0_i32, %c0_i32_0 : i32, i32
  }
  func.func @transform_3(%arg0: i32) -> (i32, i32) {
    %c0_i32 = arith.constant 0 : i32
    %c0_i32_0 = arith.constant 0 : i32
    return %arg0, %c0_i32 : i32, i32
  }
}

</mosaic_0001>

<llo_original>
// kernel: tpu_custom_call.1
$region0: #{tpu_custom_call.1}
  #allocation0 [shape = 'u32[]', space=smem, size = 0x4, offset = 0x4, fixed_abs, tag = 'smem constant byte address 0x4 - core index']
  #allocation1 [shape = 'u32[144,128]{1,0:T(1,128)}', space=vmem, size = 0x12000, scoped, tag = 'internal scratch']
  %s0 = inlined_call_operand.vmem [shape: f32[2,4,8,8,4], index: 0, kind: input, shape index: {}]
  %s1 = inlined_call_operand.vmem [shape: f32[36,8], index: 1, kind: input, shape index: {}]
  %s2 = inlined_call_operand.vmem [shape: f32[72,8], index: 2, kind: input, shape index: {}]
  %s3 = inlined_call_operand.hbm [shape: f32[2,512], index: 3, kind: output, shape index: {}]
  %s4 = sld [smem:[#allocation0]]
  $region22: #{tpu_custom_call.1} parent=0
    _
  %s6 = ssub.s32 1, %s4
  %s7 = scalar_select 0, %s6, %s4
  $region1: #{tpu_custom_call.1} parent=0
    #allocation2 [shape = 'u8[4096]{0}', space=vmem, size = 0x1000, scoped, tag = 'output window, operand 0, single buffered']
    #allocation3 [shape = 's32[1]{0}', space=sflag, size = 0x4, scoped, tag = 'scoped memory for tpu_custom_call.1']
    %8 = vsyncpa [#allocation3], 0
    // Predicated region
    $region2: #{tpu_custom_call.1} parent=1 // pred_check
      _
    $region3: #{tpu_custom_call.1} parent=1 // pred_check_branch
      %10 = sbr.rel (0) target = $region5
    $region4: #{tpu_custom_call.1} parent=1 // pred_region
      _
    $region5: #{tpu_custom_call.1} parent=1 // pred_fallthru
      _
    // Predicated region
    $region6: #{tpu_custom_call.1} parent=1 // pred_check
      _
    $region7: #{tpu_custom_call.1} parent=1 // pred_check_branch
      %12 = sbr.rel (0) target = $region9
    $region8: #{tpu_custom_call.1} parent=1 // pred_region
      _
    $region9: #{tpu_custom_call.1} parent=1 // pred_fallthru
      _
    // Predicated region
    $region10: #{tpu_custom_call.1} parent=1 // pred_check
      _
    $region11: #{tpu_custom_call.1} parent=1 // pred_check_branch
      %14 = sbr.rel (0) target = $region13
    $region12: #{tpu_custom_call.1} parent=1 // pred_region
      _
    $region13: #{tpu_custom_call.1} parent=1 // pred_fallthru
      _
    %v15 = vld [vmem:[%s0] sm:$0xff]
    %v16 = vld [vmem:[%s0 + $0x8] sm:$0xff]
    %v17 = vld [vmem:[%s0 + $0x10] sm:$0xff]
    %v18 = vld [vmem:[%s0 + $0x18] sm:$0xff]
    %v19 = vld [vmem:[%s0 + $0x20] sm:$0xff]
    %v20 = vld [vmem:[%s0 + $0x28] sm:$0xff]
    %v21 = vld [vmem:[%s0 + $0x30] sm:$0xff]
    %v22 = vld [vmem:[%s0 + $0x38] sm:$0xff]
    %v23 = vld [vmem:[%s0 + $0x40] sm:$0xff]
    %v24 = vld [vmem:[%s0 + $0x48] sm:$0xff]
    %v25 = vld [vmem:[%s0 + $0x50] sm:$0xff]
    %v26 = vld [vmem:[%s0 + $0x58] sm:$0xff]
    %v27 = vld [vmem:[%s0 + $0x60] sm:$0xff]
    %v28 = vld [vmem:[%s0 + $0x68] sm:$0xff]
    %v29 = vld [vmem:[%s0 + $0x70] sm:$0xff]
    %v30 = vld [vmem:[%s0 + $0x78] sm:$0xff]
    %v31 = vld [vmem:[%s0 + $0x80] sm:$0xff]
    %v32 = vld [vmem:[%s0 + $0x88] sm:$0xff]
    %v33 = vld [vmem:[%s0 + $0x90] sm:$0xff]
    %v34 = vld [vmem:[%s0 + $0x98] sm:$0xff]
    %v35 = vld [vmem:[%s0 + $0xa0] sm:$0xff]
    %v36 = vld [vmem:[%s0 + $0xa8] sm:$0xff]
    %v37 = vld [vmem:[%s0 + $0xb0] sm:$0xff]
    %v38 = vld [vmem:[%s0 + $0xb8] sm:$0xff]
    %v39 = vld [vmem:[%s0 + $0xc0] sm:$0xff]
    %v40 = vld [vmem:[%s0 + $0xc8] sm:$0xff]
    %v41 = vld [vmem:[%s0 + $0xd0] sm:$0xff]
    %v42 = vld [vmem:[%s0 + $0xd8] sm:$0xff]
    %v43 = vld [vmem:[%s0 + $0xe0] sm:$0xff]
    %v44 = vld [vmem:[%s0 + $0xe8] sm:$0xff]
    %v45 = vld [vmem:[%s0 + $0xf0] sm:$0xff]
    %v46 = vld [vmem:[%s0 + $0xf8] sm:$0xff]
    %v47 = vld [vmem:[%s0 + $0x100] sm:$0xff]
    %v48 = vld [vmem:[%s0 + $0x108] sm:$0xff]
    %v49 = vld [vmem:[%s0 + $0x110] sm:$0xff]
    %v50 = vld [vmem:[%s0 + $0x118] sm:$0xff]
    %v51 = vld [vmem:[%s0 + $0x120] sm:$0xff]
    %v52 = vld [vmem:[%s0 + $0x128] sm:$0xff]
    %v53 = vld [vmem:[%s0 + $0x130] sm:$0xff]
    %v54 = vld [vmem:[%s0 + $0x138] sm:$0xff]
    %v55 = vld [vmem:[%s0 + $0x140] sm:$0xff]
    %v56 = vld [vmem:[%s0 + $0x148] sm:$0xff]
    %v57 = vld [vmem:[%s0 + $0x150] sm:$0xff]
    %v58 = vld [vmem:[%s0 + $0x158] sm:$0xff]
    %v59 = vld [vmem:[%s0 + $0x160] sm:$0xff]
    %v60 = vld [vmem:[%s0 + $0x168] sm:$0xff]
    %v61 = vld [vmem:[%s0 + $0x170] sm:$0xff]
    %v62 = vld [vmem:[%s0 + $0x178] sm:$0xff]
    %v63 = vld [vmem:[%s0 + $0x180] sm:$0xff]
    %v64 = vld [vmem:[%s0 + $0x188] sm:$0xff]
    %v65 = vld [vmem:[%s0 + $0x190] sm:$0xff]
    %v66 = vld [vmem:[%s0 + $0x198] sm:$0xff]
    %v67 = vld [vmem:[%s0 + $0x1a0] sm:$0xff]
    %v68 = vld [vmem:[%s0 + $0x1a8] sm:$0xff]
    %v69 = vld [vmem:[%s0 + $0x1b0] sm:$0xff]
    %v70 = vld [vmem:[%s0 + $0x1b8] sm:$0xff]
    %v71 = vld [vmem:[%s0 + $0x1c0] sm:$0xff]
    %v72 = vld [vmem:[%s0 + $0x1c8] sm:$0xff]
    %v73 = vld [vmem:[%s0 + $0x1d0] sm:$0xff]
    %v74 = vld [vmem:[%s0 + $0x1d8] sm:$0xff]
    %v75 = vld [vmem:[%s0 + $0x1e0] sm:$0xff]
    %v76 = vld [vmem:[%s0 + $0x1e8] sm:$0xff]
    %v77 = vld [vmem:[%s0 + $0x1f0] sm:$0xff]
    %v78 = vld [vmem:[%s0 + $0x1f8] sm:$0xff]
    %vm79 = vcmask 31744
    %v80 = vsel %vm79, %v15, -inf
    %v81 = vsel %vm79, %v23, -inf
    %v82 = vmax.f32 %v80, %v81
    %v83 = vsel %vm79, %v31, -inf
    %v84 = vmax.f32 %v82, %v83
    %v85 = vsel %vm79, %v39, -inf
    %v86 = vmax.f32 %v84, %v85
    %v87 = vsel %vm79, %v16, -inf
    %v88 = vsel %vm79, %v24, -inf
    %v89 = vmax.f32 %v87, %v88
    %v90 = vsel %vm79, %v32, -inf
    %v91 = vmax.f32 %v89, %v90
    %v92 = vsel %vm79, %v40, -inf
    %v93 = vmax.f32 %v91, %v92
    %v94 = vsel %vm79, %v17, -inf
    %v95 = vsel %vm79, %v25, -inf
    %v96 = vmax.f32 %v94, %v95
    %v97 = vsel %vm79, %v33, -inf
    %v98 = vmax.f32 %v96, %v97
    %v99 = vsel %vm79, %v41, -inf
    %v100 = vmax.f32 %v98, %v99
    %v101 = vsel %vm79, %v18, -inf
    %v102 = vsel %vm79, %v26, -inf
    %v103 = vmax.f32 %v101, %v102
    %v104 = vsel %vm79, %v34, -inf
    %v105 = vmax.f32 %v103, %v104
    %v106 = vsel %vm79, %v42, -inf
    %v107 = vmax.f32 %v105, %v106
    %v108 = vsel %vm79, %v19, -inf
    %v109 = vsel %vm79, %v27, -inf
    %v110 = vmax.f32 %v108, %v109
    %v111 = vsel %vm79, %v35, -inf
    %v112 = vmax.f32 %v110, %v111
    %v113 = vsel %vm79, %v43, -inf
    %v114 = vmax.f32 %v112, %v113
    %v115 = vsel %vm79, %v20, -inf
    %v116 = vsel %vm79, %v28, -inf
    %v117 = vmax.f32 %v115, %v116
    %v118 = vsel %vm79, %v36, -inf
    %v119 = vmax.f32 %v117, %v118
    %v120 = vsel %vm79, %v44, -inf
    %v121 = vmax.f32 %v119, %v120
    %v122 = vsel %vm79, %v21, -inf
    %v123 = vsel %vm79, %v29, -inf
    %v124 = vmax.f32 %v122, %v123
    %v125 = vsel %vm79, %v37, -inf
    %v126 = vmax.f32 %v124, %v125
    %v127 = vsel %vm79, %v45, -inf
    %v128 = vmax.f32 %v126, %v127
    %v129 = vsel %vm79, %v22, -inf
    %v130 = vsel %vm79, %v30, -inf
    %v131 = vmax.f32 %v129, %v130
    %v132 = vsel %vm79, %v38, -inf
    %v133 = vmax.f32 %v131, %v132
    %v134 = vsel %vm79, %v46, -inf
    %v135 = vmax.f32 %v133, %v134
    %v136 = vsel %vm79, %v47, -inf
    %v137 = vsel %vm79, %v55, -inf
    %v138 = vmax.f32 %v136, %v137
    %v139 = vsel %vm79, %v63, -inf
    %v140 = vmax.f32 %v138, %v139
    %v141 = vsel %vm79, %v71, -inf
    %v142 = vmax.f32 %v140, %v141
    %v143 = vsel %vm79, %v48, -inf
    %v144 = vsel %vm79, %v56, -inf
    %v145 = vmax.f32 %v143, %v144
    %v146 = vsel %vm79, %v64, -inf
    %v147 = vmax.f32 %v145, %v146
    %v148 = vsel %vm79, %v72, -inf
    %v149 = vmax.f32 %v147, %v148
    %v150 = vsel %vm79, %v49, -inf
    %v151 = vsel %vm79, %v57, -inf
    %v152 = vmax.f32 %v150, %v151
    %v153 = vsel %vm79, %v65, -inf
    %v154 = vmax.f32 %v152, %v153
    %v155 = vsel %vm79, %v73, -inf
    %v156 = vmax.f32 %v154, %v155
    %v157 = vsel %vm79, %v50, -inf
    %v158 = vsel %vm79, %v58, -inf
    %v159 = vmax.f32 %v157, %v158
    %v160 = vsel %vm79, %v66, -inf
    %v161 = vmax.f32 %v159, %v160
    %v162 = vsel %vm79, %v74, -inf
    %v163 = vmax.f32 %v161, %v162
    %v164 = vsel %vm79, %v51, -inf
    %v165 = vsel %vm79, %v59, -inf
    %v166 = vmax.f32 %v164, %v165
    %v167 = vsel %vm79, %v67, -inf
    %v168 = vmax.f32 %v166, %v167
    %v169 = vsel %vm79, %v75, -inf
    %v170 = vmax.f32 %v168, %v169
    %v171 = vsel %vm79, %v52, -inf
    %v172 = vsel %vm79, %v60, -inf
    %v173 = vmax.f32 %v171, %v172
    %v174 = vsel %vm79, %v68, -inf
    %v175 = vmax.f32 %v173, %v174
    %v176 = vsel %vm79, %v76, -inf
    %v177 = vmax.f32 %v175, %v176
    %v178 = vsel %vm79, %v53, -inf
    %v179 = vsel %vm79, %v61, -inf
    %v180 = vmax.f32 %v178, %v179
    %v181 = vsel %vm79, %v69, -inf
    %v182 = vmax.f32 %v180, %v181
    %v183 = vsel %vm79, %v77, -inf
    %v184 = vmax.f32 %v182, %v183
    %v185 = vsel %vm79, %v54, -inf
    %v186 = vsel %vm79, %v62, -inf
    %v187 = vmax.f32 %v185, %v186
    %v188 = vsel %vm79, %v70, -inf
    %v189 = vmax.f32 %v187, %v188
    %v190 = vsel %vm79, %v78, -inf
    %v191 = vmax.f32 %v189, %v190
    %v192 = vld [vmem:[%s1] sm:$0xff]
    %v193 = vld [vmem:[%s1 + $0x8] sm:$0xff]
    %v194 = vld [vmem:[%s1 + $0x10] sm:$0xff]
    %v195 = vld [vmem:[%s1 + $0x18] sm:$0xff]
    %v196 = vld [vmem:[%s1 + $0x20] sm:$0xf]
    %v213 = vrot.slane %v93, 1
    %v214 = vrot.slane %v86, 1
    %v215 = vrot.slane %v100, 1
    %v216 = vrot.slane %v107, 1
    %v217 = vrot.slane %v114, 1
    %v218 = vrot.slane %v121, 1
    %v219 = vrot.slane %v128, 1
    %v220 = vrot.slane %v135, 1
    %v221 = vrot.slane %v149, 1
    %v222 = vrot.slane %v142, 1
    %v223 = vrot.slane %v156, 1
    %v224 = vrot.slane %v163, 1
    %v225 = vrot.slane %v170, 1
    %v226 = vrot.slane %v177, 1
    %v227 = vrot.slane %v184, 1
    %v228 = vrot.slane %v191, 1
    %v245 = vrot.slane %v93, 7
    %v246 = vrot.slane %v86, 7
    %v247 = vrot.slane %v100, 7
    %v248 = vrot.slane %v107, 7
    %v249 = vrot.slane %v114, 7
    %v250 = vrot.slane %v121, 7
    %v251 = vrot.slane %v128, 7
    %v252 = vrot.slane %v135, 7
    %v253 = vrot.slane %v149, 7
    %v254 = vrot.slane %v142, 7
    %v255 = vrot.slane %v156, 7
    %v256 = vrot.slane %v163, 7
    %v257 = vrot.slane %v170, 7
    %v258 = vrot.slane %v177, 7
    %v259 = vrot.slane %v184, 7
    %v260 = vrot.slane %v191, 7
    %v277 = vrot.slane %v93, 5
    %v278 = vrot.slane %v86, 5
    %v279 = vrot.slane %v100, 5
    %v280 = vrot.slane %v107, 5
    %v281 = vrot.slane %v114, 5
    %v282 = vrot.slane %v121, 5
    %v283 = vrot.slane %v128, 5
    %v284 = vrot.slane %v135, 5
    %v285 = vrot.slane %v149, 5
    %v286 = vrot.slane %v142, 5
    %v287 = vrot.slane %v156, 5
    %v288 = vrot.slane %v163, 5
    %v289 = vrot.slane %v170, 5
    %v290 = vrot.slane %v177, 5
    %v291 = vrot.slane %v184, 5
    %v292 = vrot.slane %v191, 5
    %vm309 = vcmask 1040384
    %v310 = vsel %vm309, %v213, %v245
    %v311 = vsel %vm309, %v214, %v246
    %v312 = vsel %vm309, %v215, %v247
    %v313 = vsel %vm309, %v216, %v248
    %v314 = vsel %vm309, %v217, %v249
    %v315 = vsel %vm309, %v218, %v250
    %v316 = vsel %vm309, %v219, %v251
    %v317 = vsel %vm309, %v220, %v252
    %v318 = vsel %vm309, %v221, %v253
    %v319 = vsel %vm309, %v222, %v254
    %v320 = vsel %vm309, %v223, %v255
    %v321 = vsel %vm309, %v224, %v256
    %v322 = vsel %vm309, %v225, %v257
    %v323 = vsel %vm309, %v226, %v258
    %v324 = vsel %vm309, %v227, %v259
    %v325 = vsel %vm309, %v228, %v260
    %v326 = vsel %vm309, %v245, %v277
    %v327 = vsel %vm309, %v246, %v278
    %v328 = vsel %vm309, %v247, %v279
    %v329 = vsel %vm309, %v248, %v280
    %v330 = vsel %vm309, %v249, %v281
    %v331 = vsel %vm309, %v250, %v282
    %v332 = vsel %vm309, %v251, %v283
    %v333 = vsel %vm309, %v252, %v284
    %v334 = vsel %vm309, %v253, %v285
    %v335 = vsel %vm309, %v254, %v286
    %v336 = vsel %vm309, %v255, %v287
    %v337 = vsel %vm309, %v256, %v288
    %v338 = vsel %vm309, %v257, %v289
    %v339 = vsel %vm309, %v258, %v290
    %v340 = vsel %vm309, %v259, %v291
    %v341 = vsel %vm309, %v260, %v292
    %vm370 = vcmask 1046528
    %v371 = vrot.slane %v310, 1
    %v372 = vrot.slane %v326, 1
    %v373 = vsel %vm370, %v371, %v372
    %v374 = vrot.slane %v311, 1
    %v375 = vrot.slane %v327, 1
    %v376 = vsel %vm370, %v374, %v375
    %v377 = vrot.slane %v312, 1
    %v378 = vrot.slane %v328, 1
    %v379 = vsel %vm370, %v377, %v378
    %v380 = vrot.slane %v313, 1
    %v381 = vrot.slane %v329, 1
    %v382 = vsel %vm370, %v380, %v381
    %v383 = vrot.slane %v314, 1
    %v384 = vrot.slane %v330, 1
    %v385 = vsel %vm370, %v383, %v384
    %v386 = vrot.slane %v315, 1
    %v387 = vrot.slane %v331, 1
    %v388 = vsel %vm370, %v386, %v387
    %v389 = vrot.slane %v316, 1
    %v390 = vrot.slane %v332, 1
    %v391 = vsel %vm370, %v389, %v390
    %v392 = vrot.slane %v318, 1
    %v393 = vrot.slane %v334, 1
    %v394 = vsel %vm370, %v392, %v393
    %v395 = vrot.slane %v319, 1
    %v396 = vrot.slane %v335, 1
    %v397 = vsel %vm370, %v395, %v396
    %v398 = vrot.slane %v320, 1
    %v399 = vrot.slane %v336, 1
    %v400 = vsel %vm370, %v398, %v399
    %v401 = vrot.slane %v321, 1
    %v402 = vrot.slane %v337, 1
    %v403 = vsel %vm370, %v401, %v402
    %v404 = vrot.slane %v322, 1
    %v405 = vrot.slane %v338, 1
    %v406 = vsel %vm370, %v404, %v405
    %v407 = vrot.slane %v323, 1
    %v408 = vrot.slane %v339, 1
    %v409 = vsel %vm370, %v407, %v408
    %v410 = vrot.slane %v324, 1
    %v411 = vrot.slane %v340, 1
    %v412 = vsel %vm370, %v410, %v411
    %413 = vrot.lane.b32.xlu0 %v373, 4
    %v414 = vpop.permute.xlu0 %413
    %415 = vrot.lane.b32.xlu0 %v376, 4
    %v416 = vpop.permute.xlu0 %415
    %417 = vrot.lane.b32.xlu0 %v379, 4
    %v418 = vpop.permute.xlu0 %417
    %419 = vrot.lane.b32.xlu0 %v382, 4
    %v420 = vpop.permute.xlu0 %419
    %421 = vrot.lane.b32.xlu0 %v385, 4
    %v422 = vpop.permute.xlu0 %421
    %423 = vrot.lane.b32.xlu0 %v388, 4
    %v424 = vpop.permute.xlu0 %423
    %425 = vrot.lane.b32.xlu0 %v391, 4
    %v426 = vpop.permute.xlu0 %425
    %427 = vrot.lane.b32.xlu0 %v394, 4
    %v428 = vpop.permute.xlu0 %427
    %429 = vrot.lane.b32.xlu0 %v397, 4
    %v430 = vpop.permute.xlu0 %429
    %431 = vrot.lane.b32.xlu0 %v400, 4
    %v432 = vpop.permute.xlu0 %431
    %433 = vrot.lane.b32.xlu0 %v403, 4
    %v434 = vpop.permute.xlu0 %433
    %435 = vrot.lane.b32.xlu0 %v406, 4
    %v436 = vpop.permute.xlu0 %435
    %437 = vrot.lane.b32.xlu0 %v409, 4
    %v438 = vpop.permute.xlu0 %437
    %439 = vrot.lane.b32.xlu0 %v412, 4
    %v440 = vpop.permute.xlu0 %439
    %vm455 = vcmask 1045504
    %v456 = vrot.slane %v310, 2
    %v457 = vrot.slane %v326, 2
    %v458 = vsel %vm455, %v456, %v457
    %v459 = vrot.slane %v311, 2
    %v460 = vrot.slane %v327, 2
    %v461 = vsel %vm455, %v459, %v460
    %v462 = vrot.slane %v312, 2
    %v463 = vrot.slane %v328, 2
    %v464 = vsel %vm455, %v462, %v463
    %v465 = vrot.slane %v313, 2
    %v466 = vrot.slane %v329, 2
    %v467 = vsel %vm455, %v465, %v466
    %v468 = vrot.slane %v314, 2
    %v469 = vrot.slane %v330, 2
    %v470 = vsel %vm455, %v468, %v469
    %v471 = vrot.slane %v315, 2
    %v472 = vrot.slane %v331, 2
    %v473 = vsel %vm455, %v471, %v472
    %v474 = vrot.slane %v316, 2
    %v475 = vrot.slane %v332, 2
    %v476 = vsel %vm455, %v474, %v475
    %v477 = vrot.slane %v318, 2
    %v478 = vrot.slane %v334, 2
    %v479 = vsel %vm455, %v477, %v478
    %v480 = vrot.slane %v319, 2
    %v481 = vrot.slane %v335, 2
    %v482 = vsel %vm455, %v480, %v481
    %v483 = vrot.slane %v320, 2
    %v484 = vrot.slane %v336, 2
    %v485 = vsel %vm455, %v483, %v484
    %v486 = vrot.slane %v321, 2
    %v487 = vrot.slane %v337, 2
    %v488 = vsel %vm455, %v486, %v487
    %v489 = vrot.slane %v322, 2
    %v490 = vrot.slane %v338, 2
    %v491 = vsel %vm455, %v489, %v490
    %v492 = vrot.slane %v323, 2
    %v493 = vrot.slane %v339, 2
    %v494 = vsel %vm455, %v492, %v493
    %v495 = vrot.slane %v324, 2
    %v496 = vrot.slane %v340, 2
    %v497 = vsel %vm455, %v495, %v496
    %498 = vrot.lane.b32.xlu0 %v458, 8
    %v499 = vpop.permute.xlu0 %498
    %500 = vrot.lane.b32.xlu0 %v461, 8
    %v501 = vpop.permute.xlu0 %500
    %502 = vrot.lane.b32.xlu0 %v464, 8
    %v503 = vpop.permute.xlu0 %502
    %504 = vrot.lane.b32.xlu0 %v467, 8
    %v505 = vpop.permute.xlu0 %504
    %506 = vrot.lane.b32.xlu0 %v470, 8
    %v507 = vpop.permute.xlu0 %506
    %508 = vrot.lane.b32.xlu0 %v473, 8
    %v509 = vpop.permute.xlu0 %508
    %510 = vrot.lane.b32.xlu0 %v476, 8
    %v511 = vpop.permute.xlu0 %510
    %512 = vrot.lane.b32.xlu0 %v479, 8
    %v513 = vpop.permute.xlu0 %512
    %514 = vrot.lane.b32.xlu0 %v482, 8
    %v515 = vpop.permute.xlu0 %514
    %516 = vrot.lane.b32.xlu0 %v485, 8
    %v517 = vpop.permute.xlu0 %516
    %518 = vrot.lane.b32.xlu0 %v488, 8
    %v519 = vpop.permute.xlu0 %518
    %520 = vrot.lane.b32.xlu0 %v491, 8
    %v521 = vpop.permute.xlu0 %520
    %522 = vrot.lane.b32.xlu0 %v494, 8
    %v523 = vpop.permute.xlu0 %522
    %524 = vrot.lane.b32.xlu0 %v497, 8
    %v525 = vpop.permute.xlu0 %524
    %542 = vrot.lane.b32.xlu0 %v311, 12
    %v543 = vpop.permute.xlu0 %542
    %544 = vrot.lane.b32.xlu0 %v310, 12
    %v545 = vpop.permute.xlu0 %544
    %546 = vrot.lane.b32.xlu0 %v312, 12
    %v547 = vpop.permute.xlu0 %546
    %548 = vrot.lane.b32.xlu0 %v313, 12
    %v549 = vpop.permute.xlu0 %548
    %550 = vrot.lane.b32.xlu0 %v314, 12
    %v551 = vpop.permute.xlu0 %550
    %552 = vrot.lane.b32.xlu0 %v315, 12
    %v553 = vpop.permute.xlu0 %552
    %554 = vrot.lane.b32.xlu0 %v316, 12
    %v555 = vpop.permute.xlu0 %554
    %556 = vrot.lane.b32.xlu0 %v317, 12
    %v557 = vpop.permute.xlu0 %556
    %558 = vrot.lane.b32.xlu0 %v319, 12
    %v559 = vpop.permute.xlu0 %558
    %560 = vrot.lane.b32.xlu0 %v318, 12
    %v561 = vpop.permute.xlu0 %560
    %562 = vrot.lane.b32.xlu0 %v320, 12
    %v563 = vpop.permute.xlu0 %562
    %564 = vrot.lane.b32.xlu0 %v321, 12
    %v565 = vpop.permute.xlu0 %564
    %566 = vrot.lane.b32.xlu0 %v322, 12
    %v567 = vpop.permute.xlu0 %566
    %568 = vrot.lane.b32.xlu0 %v323, 12
    %v569 = vpop.permute.xlu0 %568
    %570 = vrot.lane.b32.xlu0 %v324, 12
    %v571 = vpop.permute.xlu0 %570
    %572 = vrot.lane.b32.xlu0 %v325, 12
    %v573 = vpop.permute.xlu0 %572
    %v592 = vrot.slane %v317, 1
    %v593 = vrot.slane %v333, 1
    %v594 = vsel %vm370, %v592, %v593
    %v595 = vrot.slane %v325, 1
    %v596 = vrot.slane %v341, 1
    %v597 = vsel %vm370, %v595, %v596
    %598 = vrot.lane.b32.xlu0 %v376, 16
    %v599 = vpop.permute.xlu0 %598
    %600 = vrot.lane.b32.xlu0 %v373, 16
    %v601 = vpop.permute.xlu0 %600
    %602 = vrot.lane.b32.xlu0 %v379, 16
    %v603 = vpop.permute.xlu0 %602
    %604 = vrot.lane.b32.xlu0 %v382, 16
    %v605 = vpop.permute.xlu0 %604
    %606 = vrot.lane.b32.xlu0 %v385, 16
    %v607 = vpop.permute.xlu0 %606
    %608 = vrot.lane.b32.xlu0 %v388, 16
    %v609 = vpop.permute.xlu0 %608
    %610 = vrot.lane.b32.xlu0 %v391, 16
    %v611 = vpop.permute.xlu0 %610
    %612 = vrot.lane.b32.xlu0 %v594, 16
    %v613 = vpop.permute.xlu0 %612
    %614 = vrot.lane.b32.xlu0 %v397, 16
    %v615 = vpop.permute.xlu0 %614
    %616 = vrot.lane.b32.xlu0 %v394, 16
    %v617 = vpop.permute.xlu0 %616
    %618 = vrot.lane.b32.xlu0 %v400, 16
    %v619 = vpop.permute.xlu0 %618
    %620 = vrot.lane.b32.xlu0 %v403, 16
    %v621 = vpop.permute.xlu0 %620
    %622 = vrot.lane.b32.xlu0 %v406, 16
    %v623 = vpop.permute.xlu0 %622
    %624 = vrot.lane.b32.xlu0 %v409, 16
    %v625 = vpop.permute.xlu0 %624
    %626 = vrot.lane.b32.xlu0 %v412, 16
    %v627 = vpop.permute.xlu0 %626
    %628 = vrot.lane.b32.xlu0 %v597, 16
    %v629 = vpop.permute.xlu0 %628
    %v646 = vrot.slane %v317, 2
    %v647 = vrot.slane %v333, 2
    %v648 = vsel %vm455, %v646, %v647
    %v649 = vrot.slane %v325, 2
    %v650 = vrot.slane %v341, 2
    %v651 = vsel %vm455, %v649, %v650
    %652 = vrot.lane.b32.xlu0 %v461, 20
    %v653 = vpop.permute.xlu0 %652
    %654 = vrot.lane.b32.xlu0 %v458, 20
    %v655 = vpop.permute.xlu0 %654
    %656 = vrot.lane.b32.xlu0 %v464, 20
    %v657 = vpop.permute.xlu0 %656
    %658 = vrot.lane.b32.xlu0 %v467, 20
    %v659 = vpop.permute.xlu0 %658
    %660 = vrot.lane.b32.xlu0 %v470, 20
    %v661 = vpop.permute.xlu0 %660
    %662 = vrot.lane.b32.xlu0 %v473, 20
    %v663 = vpop.permute.xlu0 %662
    %664 = vrot.lane.b32.xlu0 %v476, 20
    %v665 = vpop.permute.xlu0 %664
    %666 = vrot.lane.b32.xlu0 %v648, 20
    %v667 = vpop.permute.xlu0 %666
    %668 = vrot.lane.b32.xlu0 %v482, 20
    %v669 = vpop.permute.xlu0 %668
    %670 = vrot.lane.b32.xlu0 %v479, 20
    %v671 = vpop.permute.xlu0 %670
    %672 = vrot.lane.b32.xlu0 %v485, 20
    %v673 = vpop.permute.xlu0 %672
    %674 = vrot.lane.b32.xlu0 %v488, 20
    %v675 = vpop.permute.xlu0 %674
    %676 = vrot.lane.b32.xlu0 %v491, 20
    %v677 = vpop.permute.xlu0 %676
    %678 = vrot.lane.b32.xlu0 %v494, 20
    %v679 = vpop.permute.xlu0 %678
    %680 = vrot.lane.b32.xlu0 %v497, 20
    %v681 = vpop.permute.xlu0 %680
    %682 = vrot.lane.b32.xlu0 %v651, 20
    %v683 = vpop.permute.xlu0 %682
    %700 = vrot.lane.b32.xlu0 %v310, 24
    %v701 = vpop.permute.xlu0 %700
    %702 = vrot.lane.b32.xlu0 %v312, 24
    %v703 = vpop.permute.xlu0 %702
    %704 = vrot.lane.b32.xlu0 %v313, 24
    %v705 = vpop.permute.xlu0 %704
    %706 = vrot.lane.b32.xlu0 %v314, 24
    %v707 = vpop.permute.xlu0 %706
    %708 = vrot.lane.b32.xlu0 %v315, 24
    %v709 = vpop.permute.xlu0 %708
    %710 = vrot.lane.b32.xlu0 %v316, 24
    %v711 = vpop.permute.xlu0 %710
    %712 = vrot.lane.b32.xlu0 %v317, 24
    %v713 = vpop.permute.xlu0 %712
    %714 = vrot.lane.b32.xlu0 %v318, 24
    %v715 = vpop.permute.xlu0 %714
    %716 = vrot.lane.b32.xlu0 %v320, 24
    %v717 = vpop.permute.xlu0 %716
    %718 = vrot.lane.b32.xlu0 %v321, 24
    %v719 = vpop.permute.xlu0 %718
    %720 = vrot.lane.b32.xlu0 %v322, 24
    %v721 = vpop.permute.xlu0 %720
    %722 = vrot.lane.b32.xlu0 %v323, 24
    %v723 = vpop.permute.xlu0 %722
    %724 = vrot.lane.b32.xlu0 %v324, 24
    %v725 = vpop.permute.xlu0 %724
    %726 = vrot.lane.b32.xlu0 %v325, 24
    %v727 = vpop.permute.xlu0 %726
    %742 = vrot.lane.b32.xlu0 %v373, 28
    %v743 = vpop.permute.xlu0 %742
    %744 = vrot.lane.b32.xlu0 %v379, 28
    %v745 = vpop.permute.xlu0 %744
    %746 = vrot.lane.b32.xlu0 %v382, 28
    %v747 = vpop.permute.xlu0 %746
    %748 = vrot.lane.b32.xlu0 %v385, 28
    %v749 = vpop.permute.xlu0 %748
    %750 = vrot.lane.b32.xlu0 %v388, 28
    %v751 = vpop.permute.xlu0 %750
    %752 = vrot.lane.b32.xlu0 %v391, 28
    %v753 = vpop.permute.xlu0 %752
    %754 = vrot.lane.b32.xlu0 %v594, 28
    %v755 = vpop.permute.xlu0 %754
    %756 = vrot.lane.b32.xlu0 %v394, 28
    %v757 = vpop.permute.xlu0 %756
    %758 = vrot.lane.b32.xlu0 %v400, 28
    %v759 = vpop.permute.xlu0 %758
    %760 = vrot.lane.b32.xlu0 %v403, 28
    %v761 = vpop.permute.xlu0 %760
    %762 = vrot.lane.b32.xlu0 %v406, 28
    %v763 = vpop.permute.xlu0 %762
    %764 = vrot.lane.b32.xlu0 %v409, 28
    %v765 = vpop.permute.xlu0 %764
    %766 = vrot.lane.b32.xlu0 %v412, 28
    %v767 = vpop.permute.xlu0 %766
    %768 = vrot.lane.b32.xlu0 %v597, 28
    %v769 = vpop.permute.xlu0 %768
    %784 = vrot.lane.b32.xlu0 %v458, 32
    %v785 = vpop.permute.xlu0 %784
    %786 = vrot.lane.b32.xlu0 %v464, 32
    %v787 = vpop.permute.xlu0 %786
    %788 = vrot.lane.b32.xlu0 %v467, 32
    %v789 = vpop.permute.xlu0 %788
    %790 = vrot.lane.b32.xlu0 %v470, 32
    %v791 = vpop.permute.xlu0 %790
    %792 = vrot.lane.b32.xlu0 %v473, 32
    %v793 = vpop.permute.xlu0 %792
    %794 = vrot.lane.b32.xlu0 %v476, 32
    %v795 = vpop.permute.xlu0 %794
    %796 = vrot.lane.b32.xlu0 %v648, 32
    %v797 = vpop.permute.xlu0 %796
    %798 = vrot.lane.b32.xlu0 %v479, 32
    %v799 = vpop.permute.xlu0 %798
    %800 = vrot.lane.b32.xlu0 %v485, 32
    %v801 = vpop.permute.xlu0 %800
    %802 = vrot.lane.b32.xlu0 %v488, 32
    %v803 = vpop.permute.xlu0 %802
    %804 = vrot.lane.b32.xlu0 %v491, 32
    %v805 = vpop.permute.xlu0 %804
    %806 = vrot.lane.b32.xlu0 %v494, 32
    %v807 = vpop.permute.xlu0 %806
    %808 = vrot.lane.b32.xlu0 %v497, 32
    %v809 = vpop.permute.xlu0 %808
    %810 = vrot.lane.b32.xlu0 %v651, 32
    %v811 = vpop.permute.xlu0 %810
    %v826 = vsel %vm79, %v310, %v414
    %v827 = vsel %vm79, %v311, %v416
    %v828 = vsel %vm79, %v312, %v418
    %v829 = vsel %vm79, %v313, %v420
    %v830 = vsel %vm79, %v314, %v422
    %v831 = vsel %vm79, %v315, %v424
    %v832 = vsel %vm79, %v316, %v426
    %v833 = vsel %vm79, %v318, %v428
    %v834 = vsel %vm79, %v319, %v430
    %v835 = vsel %vm79, %v320, %v432
    %v836 = vsel %vm79, %v321, %v434
    %v837 = vsel %vm79, %v322, %v436
    %v838 = vsel %vm79, %v323, %v438
    %v839 = vsel %vm79, %v324, %v440
    %vm840 = vcmask 64512
    %v841 = vsel %vm840, %v826, %v499
    %v842 = vsel %vm840, %v827, %v501
    %v843 = vsel %vm840, %v828, %v503
    %v844 = vsel %vm840, %v829, %v505
    %v845 = vsel %vm840, %v830, %v507
    %v846 = vsel %vm840, %v831, %v509
    %v847 = vsel %vm840, %v832, %v511
    %v848 = vsel %vm840, %v833, %v513
    %v849 = vsel %vm840, %v834, %v515
    %v850 = vsel %vm840, %v835, %v517
    %v851 = vsel %vm840, %v836, %v519
    %v852 = vsel %vm840, %v837, %v521
    %v853 = vsel %vm840, %v838, %v523
    %v854 = vsel %vm840, %v839, %v525
    %vm855 = vcmask 97280
    %v856 = vsel %vm855, %v841, %v543
    %v857 = vsel %vm855, %v842, %v545
    %v858 = vsel %vm855, %v841, %v547
    %v859 = vsel %vm855, %v843, %v549
    %v860 = vsel %vm855, %v844, %v551
    %v861 = vsel %vm855, %v845, %v553
    %v862 = vsel %vm855, %v846, %v555
    %v863 = vsel %vm855, %v847, %v557
    %v864 = vsel %vm855, %v848, %v559
    %v865 = vsel %vm855, %v849, %v561
    %v866 = vsel %vm855, %v848, %v563
    %v867 = vsel %vm855, %v850, %v565
    %v868 = vsel %vm855, %v851, %v567
    %v869 = vsel %vm855, %v852, %v569
    %v870 = vsel %vm855, %v853, %v571
    %v871 = vsel %vm855, %v854, %v573
    %vm872 = vcmask 130048
    %v873 = vsel %vm872, %v856, %v599
    %v874 = vsel %vm872, %v857, %v601
    %v875 = vsel %vm872, %v858, %v603
    %v876 = vsel %vm872, %v859, %v605
    %v877 = vsel %vm872, %v860, %v607
    %v878 = vsel %vm872, %v861, %v609
    %v879 = vsel %vm872, %v862, %v611
    %v880 = vsel %vm872, %v863, %v613
    %v881 = vsel %vm872, %v864, %v615
    %v882 = vsel %vm872, %v865, %v617
    %v883 = vsel %vm872, %v866, %v619
    %v884 = vsel %vm872, %v867, %v621
    %v885 = vsel %vm872, %v868, %v623
    %v886 = vsel %vm872, %v869, %v625
    %v887 = vsel %vm872, %v870, %v627
    %v888 = vsel %vm872, %v871, %v629
    %vm889 = vcmask 162816
    %v890 = vsel %vm889, %v873, %v653
    %v891 = vsel %vm889, %v874, %v655
    %v892 = vsel %vm889, %v875, %v657
    %v893 = vsel %vm889, %v876, %v659
    %v894 = vsel %vm889, %v877, %v661
    %v895 = vsel %vm889, %v878, %v663
    %v896 = vsel %vm889, %v879, %v665
    %v897 = vsel %vm889, %v880, %v667
    %v898 = vsel %vm889, %v881, %v669
    %v899 = vsel %vm889, %v882, %v671
    %v900 = vsel %vm889, %v883, %v673
    %v901 = vsel %vm889, %v884, %v675
    %v902 = vsel %vm889, %v885, %v677
    %v903 = vsel %vm889, %v886, %v679
    %v904 = vsel %vm889, %v887, %v681
    %v905 = vsel %vm889, %v888, %v683
    %vm906 = vcmask 195584
    %v907 = vsel %vm906, %v890, %v701
    %v908 = vsel %vm906, %v891, %v703
    %v909 = vsel %vm906, %v892, %v705
    %v910 = vsel %vm906, %v893, %v707
    %v911 = vsel %vm906, %v894, %v709
    %v912 = vsel %vm906, %v895, %v711
    %v913 = vsel %vm906, %v896, %v713
    %v914 = vsel %vm906, %v897, %v711
    %v915 = vsel %vm906, %v898, %v715
    %v916 = vsel %vm906, %v899, %v717
    %v917 = vsel %vm906, %v900, %v719
    %v918 = vsel %vm906, %v901, %v721
    %v919 = vsel %vm906, %v902, %v723
    %v920 = vsel %vm906, %v903, %v725
    %v921 = vsel %vm906, %v904, %v727
    %v922 = vsel %vm906, %v905, %v725
    %vm923 = vcmask 228352
    %v924 = vsel %vm923, %v907, %v743
    %v925 = vsel %vm923, %v908, %v745
    %v926 = vsel %vm923, %v909, %v747
    %v927 = vsel %vm923, %v910, %v749
    %v928 = vsel %vm923, %v911, %v751
    %v929 = vsel %vm923, %v912, %v753
    %v930 = vsel %vm923, %v913, %v755
    %v931 = vsel %vm923, %v914, %v753
    %v932 = vsel %vm923, %v915, %v757
    %v933 = vsel %vm923, %v916, %v759
    %v934 = vsel %vm923, %v917, %v761
    %v935 = vsel %vm923, %v918, %v763
    %v936 = vsel %vm923, %v919, %v765
    %v937 = vsel %vm923, %v920, %v767
    %v938 = vsel %vm923, %v921, %v769
    %v939 = vsel %vm923, %v922, %v767
    %vm940 = vcmask 261120
    %v941 = vsel %vm940, %v924, %v785
    %v942 = vsel %vm940, %v925, %v787
    %v943 = vsel %vm940, %v926, %v789
    %v944 = vsel %vm940, %v927, %v791
    %v945 = vsel %vm940, %v928, %v793
    %v946 = vsel %vm940, %v929, %v795
    %v947 = vsel %vm940, %v930, %v797
    %v948 = vsel %vm940, %v931, %v795
    %v949 = vsel %vm940, %v932, %v799
    %v950 = vsel %vm940, %v933, %v801
    %v951 = vsel %vm940, %v934, %v803
    %v952 = vsel %vm940, %v935, %v805
    %v953 = vsel %vm940, %v936, %v807
    %v954 = vsel %vm940, %v937, %v809
    %v955 = vsel %vm940, %v938, %v811
    %v956 = vsel %vm940, %v939, %v809
    %vm957 = vcmask 293888
    %v959 = vsel %vm957, %v941, 0
    %v962 = vsel %vm957, %v942, 0
    %v965 = vsel %vm957, %v943, 0
    %v968 = vsel %vm957, %v944, 0
    %v971 = vsel %vm957, %v945, 0
    %v974 = vsel %vm957, %v946, 0
    %v977 = vsel %vm957, %v947, 0
    %v980 = vsel %vm957, %v948, 0
    %v983 = vsel %vm957, %v949, 0
    %v986 = vsel %vm957, %v950, 0
    %v989 = vsel %vm957, %v951, 0
    %v992 = vsel %vm957, %v952, 0
    %v995 = vsel %vm957, %v953, 0
    %v998 = vsel %vm957, %v954, 0
    %v1001 = vsel %vm957, %v955, 0
    %v1004 = vsel %vm957, %v956, 0
    %vm1006 = vcmask 1043456
    %v1008 = vsel %vm1006, %v196, 0
    %1010 = vmatprep.subr.mxu0 0.0
    %1011 = vmatpush1.msra.mxu0 %v192
    %1012 = vmatprep.subr.mxu0 0.0
    %1013 = vmatpush1.msra.mxu0 %v193
    %1014 = vmatprep.subr.mxu0 0.0
    %1015 = vmatpush1.msra.mxu0 %v194
    %1016 = vmatprep.subr.mxu0 0.0
    %1017 = vmatpush1.msra.mxu0 %v195
    %1018 = vmatprep.subr.mxu0 0.0
    %1019 = vmatpush1.msra.mxu0 %v1008
    %1020 = vmatprep.subr.mxu0 0.0
    %1021 = vmatpush1.msra.mxu0 0.0
    %1022 = vmatprep.subr.mxu0 0.0
    %1023 = vmatpush1.msra.mxu0 0.0
    %1024 = vmatprep.subr.mxu0 0.0
    %1025 = vmatpush1.msra.mxu0 0.0
    %1026 = vmatprep.subr.mxu0 0.0
    %1027 = vmatpush1.msra.mxu0 0.0
    %1028 = vmatprep.subr.mxu0 0.0
    %1029 = vmatpush1.msra.mxu0 0.0
    %1030 = vmatprep.subr.mxu0 0.0
    %1031 = vmatpush1.msra.mxu0 0.0
    %1032 = vmatprep.subr.mxu0 0.0
    %1033 = vmatpush1.msra.mxu0 0.0
    %1034 = vmatprep.subr.mxu0 0.0
    %1035 = vmatpush1.msra.mxu0 0.0
    %1036 = vmatprep.subr.mxu0 0.0
    %1037 = vmatpush1.msra.mxu0 0.0
    %1038 = vmatprep.subr.mxu0 0.0
    %1039 = vmatpush1.msra.mxu0 0.0
    %1040 = vmatprep.subr.mxu0 0.0
    %1041 = vmatpush1.msra.mxu0 0.0
    %1042 = vmatprep.subr.mxu0 0.0
    %1043 = vmatpush1.msra.mxu0 0.0
    %1044 = vmatprep.subr.mxu0 0.0
    %1045 = vmatpush1.msra.mxu0 0.0
    %1046 = vmatprep.subr.mxu0 0.0
    %1047 = vmatpush1.msra.mxu0 0.0
    %1048 = vmatprep.subr.mxu0 0.0
    %1049 = vmatpush1.msra.mxu0 0.0
    %1050 = vmatprep.subr.mxu0 0.0
    %1051 = vmatpush1.msra.mxu0 0.0
    %1052 = vmatprep.subr.mxu0 0.0
    %1053 = vmatpush1.msra.mxu0 0.0
    %1054 = vmatprep.subr.mxu0 0.0
    %1055 = vmatpush1.msra.mxu0 0.0
    %1056 = vmatprep.subr.mxu0 0.0
    %1057 = vmatpush1.msra.mxu0 0.0
    %1058 = vmatprep.subr.mxu0 0.0
    %1059 = vmatpush1.msra.mxu0 0.0
    %1060 = vmatprep.subr.mxu0 0.0
    %1061 = vmatpush1.msra.mxu0 0.0
    %1062 = vmatprep.subr.mxu0 0.0
    %1063 = vmatpush1.msra.mxu0 0.0
    %1064 = vmatprep.subr.mxu0 0.0
    %1065 = vmatpush1.msra.mxu0 0.0
    %1066 = vmatprep.subr.mxu0 0.0
    %1067 = vmatpush1.msra.mxu0 0.0
    %1068 = vmatprep.subr.mxu0 0.0
    %1069 = vmatpush1.msra.mxu0 0.0
    %1070 = vmatprep.subr.mxu0 0.0
    %1071 = vmatpush1.msra.mxu0 0.0
    %1072 = vmatprep.subr.mxu0 0.0
    %1073 = vmatpush1.msra.mxu0 0.0
    %1074 = vmatprep.mubr.f32.mxu0 0.0
    %1075 = vmatmul.mubr.f32.gmra.mrb[0].mxu0 %v959
    %v1076 = vpop.f32.mrb[0].mxu0
    %v1077 = vadd.f32 0.0, %v1076
    %v1078 = vpop.f32.mrb[0].mxu0
    %1079 = vmatprep.mubr.f32.mxu0 0.0
    %1080 = vmatmul.mubr.f32.gmra.mrb[0].mxu0 %v962
    %v1081 = vpop.f32.mrb[0].mxu0
    %v1082 = vadd.f32 0.0, %v1081
    %v1083 = vpop.f32.mrb[0].mxu0
    %1084 = vmatprep.mubr.f32.mxu0 0.0
    %1085 = vmatmul.mubr.f32.gmra.mrb[0].mxu0 %v965
    %v1086 = vpop.f32.mrb[0].mxu0
    %v1087 = vadd.f32 0.0, %v1086
    %v1088 = vpop.f32.mrb[0].mxu0
    %1089 = vmatprep.mubr.f32.mxu0 0.0
    %1090 = vmatmul.mubr.f32.gmra.mrb[0].mxu0 %v968
    %v1091 = vpop.f32.mrb[0].mxu0
    %v1092 = vadd.f32 0.0, %v1091
    %v1093 = vpop.f32.mrb[0].mxu0
    %1094 = vmatprep.mubr.f32.mxu0 0.0
    %1095 = vmatmul.mubr.f32.gmra.mrb[0].mxu0 %v971
    %v1096 = vpop.f32.mrb[0].mxu0
    %v1097 = vadd.f32 0.0, %v1096
    %v1098 = vpop.f32.mrb[0].mxu0
    %1099 = vmatprep.mubr.f32.mxu0 0.0
    %1100 = vmatmul.mubr.f32.gmra.mrb[0].mxu0 %v974
    %v1101 = vpop.f32.mrb[0].mxu0
    %v1102 = vadd.f32 0.0, %v1101
    %v1103 = vpop.f32.mrb[0].mxu0
    %1104 = vmatprep.mubr.f32.mxu0 0.0
    %1105 = vmatmul.mubr.f32.gmra.mrb[0].mxu0 %v977
    %v1106 = vpop.f32.mrb[0].mxu0
    %v1107 = vadd.f32 0.0, %v1106
    %v1108 = vpop.f32.mrb[0].mxu0
    %1109 = vmatprep.mubr.f32.mxu0 0.0
    %1110 = vmatmul.mubr.f32.gmra.mrb[0].mxu0 %v980
    %v1111 = vpop.f32.mrb[0].mxu0
    %v1112 = vadd.f32 0.0, %v1111
    %v1113 = vpop.f32.mrb[0].mxu0
    %1114 = vmatprep.mubr.f32.mxu0 0.0
    %1115 = vmatmul.mubr.f32.gmra.mrb[0].mxu0 %v983
    %v1116 = vpop.f32.mrb[0].mxu0
    %v1117 = vadd.f32 0.0, %v1116
    %v1118 = vpop.f32.mrb[0].mxu0
    %1119 = vmatprep.mubr.f32.mxu0 0.0
    %1120 = vmatmul.mubr.f32.gmra.mrb[0].mxu0 %v986
    %v1121 = vpop.f32.mrb[0].mxu0
    %v1122 = vadd.f32 0.0, %v1121
    %v1123 = vpop.f32.mrb[0].mxu0
    %1124 = vmatprep.mubr.f32.mxu0 0.0
    %1125 = vmatmul.mubr.f32.gmra.mrb[0].mxu0 %v989
    %v1126 = vpop.f32.mrb[0].mxu0
    %v1127 = vadd.f32 0.0, %v1126
    %v1128 = vpop.f32.mrb[0].mxu0
    %1129 = vmatprep.mubr.f32.mxu0 0.0
    %1130 = vmatmul.mubr.f32.gmra.mrb[0].mxu0 %v992
    %v1131 = vpop.f32.mrb[0].mxu0
    %v1132 = vadd.f32 0.0, %v1131
    %v1133 = vpop.f32.mrb[0].mxu0
    %1134 = vmatprep.mubr.f32.mxu0 0.0
    %1135 = vmatmul.mubr.f32.gmra.mrb[0].mxu0 %v995
    %v1136 = vpop.f32.mrb[0].mxu0
    %v1137 = vadd.f32 0.0, %v1136
    %v1138 = vpop.f32.mrb[0].mxu0
    %1139 = vmatprep.mubr.f32.mxu0 0.0
    %1140 = vmatmul.mubr.f32.gmra.mrb[0].mxu0 %v998
    %v1141 = vpop.f32.mrb[0].mxu0
    %v1142 = vadd.f32 0.0, %v1141
    %v1143 = vpop.f32.mrb[0].mxu0
    %1144 = vmatprep.mubr.f32.mxu0 0.0
    %1145 = vmatmul.mubr.f32.gmra.mrb[0].mxu0 %v1001
    %v1146 = vpop.f32.mrb[0].mxu0
    %v1147 = vadd.f32 0.0, %v1146
    %v1148 = vpop.f32.mrb[0].mxu0
    %1149 = vmatprep.mubr.f32.mxu0 0.0
    %1150 = vmatmul.mubr.f32.gmra.mrb[0].mxu0 %v1004
    %v1151 = vpop.f32.mrb[0].mxu0
    %v1152 = vadd.f32 0.0, %v1151
    %v1153 = vpop.f32.mrb[0].mxu0
    %1154 = vdwg.mxu0
    %v1155 = vsel %vm840, %v1077, 0.0
    %v1156 = vsel %vm840, %v1082, 0.0
    %v1157 = vadd.f32 %v1155, %v1156
    %v1158 = vsel %vm840, %v1087, 0.0
    %v1159 = vadd.f32 %v1157, %v1158
    %v1160 = vsel %vm840, %v1092, 0.0
    %v1161 = vadd.f32 %v1159, %v1160
    %v1162 = vsel %vm840, %v1097, 0.0
    %v1163 = vadd.f32 %v1161, %v1162
    %v1164 = vsel %vm840, %v1102, 0.0
    %v1165 = vadd.f32 %v1163, %v1164
    %v1166 = vsel %vm840, %v1107, 0.0
    %v1167 = vadd.f32 %v1165, %v1166
    %v1168 = vsel %vm840, %v1112, 0.0
    %v1169 = vadd.f32 %v1167, %v1168
    %v1170 = vrot.slane %v1169, 4
    %v1171 = vadd.f32 %v1169, %v1170
    %v1172 = vrot.slane %v1171, 2
    %v1173 = vadd.f32 %v1171, %v1172
    %v1174 = vrot.slane %v1173, 1
    %v1175 = vadd.f32 %v1173, %v1174
    %v1176 = vsel %vm840, %v1117, 0.0
    %v1177 = vsel %vm840, %v1122, 0.0
    %v1178 = vadd.f32 %v1176, %v1177
    %v1179 = vsel %vm840, %v1127, 0.0
    %v1180 = vadd.f32 %v1178, %v1179
    %v1181 = vsel %vm840, %v1132, 0.0
    %v1182 = vadd.f32 %v1180, %v1181
    %v1183 = vsel %vm840, %v1137, 0.0
    %v1184 = vadd.f32 %v1182, %v1183
    %v1185 = vsel %vm840, %v1142, 0.0
    %v1186 = vadd.f32 %v1184, %v1185
    %v1187 = vsel %vm840, %v1147, 0.0
    %v1188 = vadd.f32 %v1186, %v1187
    %v1189 = vsel %vm840, %v1152, 0.0
    %v1190 = vadd.f32 %v1188, %v1189
    %v1191 = vrot.slane %v1190, 4
    %v1192 = vadd.f32 %v1190, %v1191
    %v1193 = vrot.slane %v1192, 2
    %v1194 = vadd.f32 %v1192, %v1193
    %v1195 = vrot.slane %v1194, 1
    %v1196 = vadd.f32 %v1194, %v1195
    %v1197 = vmul.f32 %v1175, 0.015625
    %v1198 = vmul.f32 %v1196, 0.015625
    %v1199 = vmul.f32 %v1077, %v1077
    %v1200 = vmul.f32 %v1082, %v1082
    %v1201 = vmul.f32 %v1087, %v1087
    %v1202 = vmul.f32 %v1092, %v1092
    %v1203 = vmul.f32 %v1097, %v1097
    %v1204 = vmul.f32 %v1102, %v1102
    %v1205 = vmul.f32 %v1107, %v1107
    %v1206 = vmul.f32 %v1112, %v1112
    %v1207 = vmul.f32 %v1117, %v1117
    %v1208 = vmul.f32 %v1122, %v1122
    %v1209 = vmul.f32 %v1127, %v1127
    %v1210 = vmul.f32 %v1132, %v1132
    %v1211 = vmul.f32 %v1137, %v1137
    %v1212 = vmul.f32 %v1142, %v1142
    %v1213 = vmul.f32 %v1147, %v1147
    %v1214 = vmul.f32 %v1152, %v1152
    %v1215 = vsel %vm840, %v1199, 0.0
    %v1216 = vsel %vm840, %v1200, 0.0
    %v1217 = vadd.f32 %v1215, %v1216
    %v1218 = vsel %vm840, %v1201, 0.0
    %v1219 = vadd.f32 %v1217, %v1218
    %v1220 = vsel %vm840, %v1202, 0.0
    %v1221 = vadd.f32 %v1219, %v1220
    %v1222 = vsel %vm840, %v1203, 0.0
    %v1223 = vadd.f32 %v1221, %v1222
    %v1224 = vsel %vm840, %v1204, 0.0
    %v1225 = vadd.f32 %v1223, %v1224
    %v1226 = vsel %vm840, %v1205, 0.0
    %v1227 = vadd.f32 %v1225, %v1226
    %v1228 = vsel %vm840, %v1206, 0.0
    %v1229 = vadd.f32 %v1227, %v1228
    %v1230 = vrot.slane %v1229, 4
    %v1231 = vadd.f32 %v1229, %v1230
    %v1232 = vrot.slane %v1231, 2
    %v1233 = vadd.f32 %v1231, %v1232
    %v1234 = vrot.slane %v1233, 1
    %v1235 = vadd.f32 %v1233, %v1234
    %v1236 = vsel %vm840, %v1207, 0.0
    %v1237 = vsel %vm840, %v1208, 0.0
    %v1238 = vadd.f32 %v1236, %v1237
    %v1239 = vsel %vm840, %v1209, 0.0
    %v1240 = vadd.f32 %v1238, %v1239
    %v1241 = vsel %vm840, %v1210, 0.0
    %v1242 = vadd.f32 %v1240, %v1241
    %v1243 = vsel %vm840, %v1211, 0.0
    %v1244 = vadd.f32 %v1242, %v1243
    %v1245 = vsel %vm840, %v1212, 0.0
    %v1246 = vadd.f32 %v1244, %v1245
    %v1247 = vsel %vm840, %v1213, 0.0
    %v1248 = vadd.f32 %v1246, %v1247
    %v1249 = vsel %vm840, %v1214, 0.0
    %v1250 = vadd.f32 %v1248, %v1249
    %v1251 = vrot.slane %v1250, 4
    %v1252 = vadd.f32 %v1250, %v1251
    %v1253 = vrot.slane %v1252, 2
    %v1254 = vadd.f32 %v1252, %v1253
    %v1255 = vrot.slane %v1254, 1
    %v1256 = vadd.f32 %v1254, %v1255
    %v1257 = vmul.f32 %v1235, 0.015625
    %v1258 = vmul.f32 %v1256, 0.015625
    %v1259 = vmul.f32 %v1197, %v1197
    %v1260 = vmul.f32 %v1198, %v1198
    %v1261 = vsub.f32 %v1257, %v1259
    %v1262 = vsub.f32 %v1258, %v1260
    %v1263 = vmax.f32 %v1261, 0.0
    %v1264 = vmax.f32 %v1262, 0.0
    %v1265 = vadd.f32 %v1263, 1e-05
    %v1266 = vadd.f32 %v1264, 1e-05
    %v1267 = vrsqrt.pop %v1265
    %v1268 = vrsqrt.pop %v1266
    %v1269 = vsub.f32 %v1077, %v1197
    %v1270 = vsub.f32 %v1082, %v1197
    %v1271 = vsub.f32 %v1087, %v1197
    %v1272 = vsub.f32 %v1092, %v1197
    %v1273 = vsub.f32 %v1097, %v1197
    %v1274 = vsub.f32 %v1102, %v1197
    %v1275 = vsub.f32 %v1107, %v1197
    %v1276 = vsub.f32 %v1112, %v1197
    %v1277 = vsub.f32 %v1117, %v1198
    %v1278 = vsub.f32 %v1122, %v1198
    %v1279 = vsub.f32 %v1127, %v1198
    %v1280 = vsub.f32 %v1132, %v1198
    %v1281 = vsub.f32 %v1137, %v1198
    %v1282 = vsub.f32 %v1142, %v1198
    %v1283 = vsub.f32 %v1147, %v1198
    %v1284 = vsub.f32 %v1152, %v1198
    %v1285 = vmul.f32 %v1269, %v1267
    %v1286 = vmul.f32 %v1270, %v1267
    %v1287 = vmul.f32 %v1271, %v1267
    %v1288 = vmul.f32 %v1272, %v1267
    %v1289 = vmul.f32 %v1273, %v1267
    %v1290 = vmul.f32 %v1274, %v1267
    %v1291 = vmul.f32 %v1275, %v1267
    %v1292 = vmul.f32 %v1276, %v1267
    %v1293 = vmul.f32 %v1277, %v1268
    %v1294 = vmul.f32 %v1278, %v1268
    %v1295 = vmul.f32 %v1279, %v1268
    %v1296 = vmul.f32 %v1280, %v1268
    %v1297 = vmul.f32 %v1281, %v1268
    %v1298 = vmul.f32 %v1282, %v1268
    %v1299 = vmul.f32 %v1283, %v1268
    %v1300 = vmul.f32 %v1284, %v1268
    %v1301 = vmax.f32 %v1285, 0.0
    %v1302 = vmax.f32 %v1286, 0.0
    %v1303 = vmax.f32 %v1287, 0.0
    %v1304 = vmax.f32 %v1288, 0.0
    %v1305 = vmax.f32 %v1289, 0.0
    %v1306 = vmax.f32 %v1290, 0.0
    %v1307 = vmax.f32 %v1291, 0.0
    %v1308 = vmax.f32 %v1292, 0.0
    %v1309 = vmax.f32 %v1293, 0.0
    %v1310 = vmax.f32 %v1294, 0.0
    %v1311 = vmax.f32 %v1295, 0.0
    %v1312 = vmax.f32 %v1296, 0.0
    %v1313 = vmax.f32 %v1297, 0.0
    %v1314 = vmax.f32 %v1298, 0.0
    %v1315 = vmax.f32 %v1299, 0.0
    %v1316 = vmax.f32 %v1300, 0.0
    %v1317 = vld [vmem:[%s2] sm:$0xff]
    %v1318 = vld [vmem:[%s2 + $0x8] sm:$0xff]
    %v1319 = vld [vmem:[%s2 + $0x10] sm:$0xff]
    %v1320 = vld [vmem:[%s2 + $0x18] sm:$0xff]
    %v1321 = vld [vmem:[%s2 + $0x20] sm:$0xff]
    %v1322 = vld [vmem:[%s2 + $0x28] sm:$0xff]
    %v1323 = vld [vmem:[%s2 + $0x30] sm:$0xff]
    %v1324 = vld [vmem:[%s2 + $0x38] sm:$0xff]
    %v1325 = vld [vmem:[%s2 + $0x40] sm:$0xff]
    %v1342 = vrot.slane %v1302, 1
    %v1343 = vrot.slane %v1301, 1
    %v1344 = vrot.slane %v1303, 1
    %v1345 = vrot.slane %v1304, 1
    %v1346 = vrot.slane %v1305, 1
    %v1347 = vrot.slane %v1306, 1
    %v1348 = vrot.slane %v1307, 1
    %v1349 = vrot.slane %v1308, 1
    %v1350 = vrot.slane %v1310, 1
    %v1351 = vrot.slane %v1309, 1
    %v1352 = vrot.slane %v1311, 1
    %v1353 = vrot.slane %v1312, 1
    %v1354 = vrot.slane %v1313, 1
    %v1355 = vrot.slane %v1314, 1
    %v1356 = vrot.slane %v1315, 1
    %v1357 = vrot.slane %v1316, 1
    %v1374 = vrot.slane %v1302, 7
    %v1375 = vrot.slane %v1301, 7
    %v1376 = vrot.slane %v1303, 7
    %v1377 = vrot.slane %v1304, 7
    %v1378 = vrot.slane %v1305, 7
    %v1379 = vrot.slane %v1306, 7
    %v1380 = vrot.slane %v1307, 7
    %v1381 = vrot.slane %v1308, 7
    %v1382 = vrot.slane %v1310, 7
    %v1383 = vrot.slane %v1309, 7
    %v1384 = vrot.slane %v1311, 7
    %v1385 = vrot.slane %v1312, 7
    %v1386 = vrot.slane %v1313, 7
    %v1387 = vrot.slane %v1314, 7
    %v1388 = vrot.slane %v1315, 7
    %v1389 = vrot.slane %v1316, 7
    %v1406 = vrot.slane %v1302, 5
    %v1407 = vrot.slane %v1301, 5
    %v1408 = vrot.slane %v1303, 5
    %v1409 = vrot.slane %v1304, 5
    %v1410 = vrot.slane %v1305, 5
    %v1411 = vrot.slane %v1306, 5
    %v1412 = vrot.slane %v1307, 5
    %v1413 = vrot.slane %v1308, 5
    %v1414 = vrot.slane %v1310, 5
    %v1415 = vrot.slane %v1309, 5
    %v1416 = vrot.slane %v1311, 5
    %v1417 = vrot.slane %v1312, 5
    %v1418 = vrot.slane %v1313, 5
    %v1419 = vrot.slane %v1314, 5
    %v1420 = vrot.slane %v1315, 5
    %v1421 = vrot.slane %v1316, 5
    %v1438 = vsel %vm309, %v1342, %v1374
    %v1439 = vsel %vm309, %v1343, %v1375
    %v1440 = vsel %vm309, %v1344, %v1376
    %v1441 = vsel %vm309, %v1345, %v1377
    %v1442 = vsel %vm309, %v1346, %v1378
    %v1443 = vsel %vm309, %v1347, %v1379
    %v1444 = vsel %vm309, %v1348, %v1380
    %v1445 = vsel %vm309, %v1349, %v1381
    %v1446 = vsel %vm309, %v1350, %v1382
    %v1447 = vsel %vm309, %v1351, %v1383
    %v1448 = vsel %vm309, %v1352, %v1384
    %v1449 = vsel %vm309, %v1353, %v1385
    %v1450 = vsel %vm309, %v1354, %v1386
    %v1451 = vsel %vm309, %v1355, %v1387
    %v1452 = vsel %vm309, %v1356, %v1388
    %v1453 = vsel %vm309, %v1357, %v1389
    %v1454 = vsel %vm309, %v1374, %v1406
    %v1455 = vsel %vm309, %v1375, %v1407
    %v1456 = vsel %vm309, %v1376, %v1408
    %v1457 = vsel %vm309, %v1377, %v1409
    %v1458 = vsel %vm309, %v1378, %v1410
    %v1459 = vsel %vm309, %v1379, %v1411
    %v1460 = vsel %vm309, %v1380, %v1412
    %v1461 = vsel %vm309, %v1381, %v1413
    %v1462 = vsel %vm309, %v1382, %v1414
    %v1463 = vsel %vm309, %v1383, %v1415
    %v1464 = vsel %vm309, %v1384, %v1416
    %v1465 = vsel %vm309, %v1385, %v1417
    %v1466 = vsel %vm309, %v1386, %v1418
    %v1467 = vsel %vm309, %v1387, %v1419
    %v1468 = vsel %vm309, %v1388, %v1420
    %v1469 = vsel %vm309, %v1389, %v1421
    %v1498 = vrot.slane %v1438, 1
    %v1499 = vrot.slane %v1454, 1
    %v1500 = vsel %vm370, %v1498, %v1499
    %v1501 = vrot.slane %v1439, 1
    %v1502 = vrot.slane %v1455, 1
    %v1503 = vsel %vm370, %v1501, %v1502
    %v1504 = vrot.slane %v1440, 1
    %v1505 = vrot.slane %v1456, 1
    %v1506 = vsel %vm370, %v1504, %v1505
    %v1507 = vrot.slane %v1441, 1
    %v1508 = vrot.slane %v1457, 1
    %v1509 = vsel %vm370, %v1507, %v1508
    %v1510 = vrot.slane %v1442, 1
    %v1511 = vrot.slane %v1458, 1
    %v1512 = vsel %vm370, %v1510, %v1511
    %v1513 = vrot.slane %v1443, 1
    %v1514 = vrot.slane %v1459, 1
    %v1515 = vsel %vm370, %v1513, %v1514
    %v1516 = vrot.slane %v1444, 1
    %v1517 = vrot.slane %v1460, 1
    %v1518 = vsel %vm370, %v1516, %v1517
    %v1519 = vrot.slane %v1446, 1
    %v1520 = vrot.slane %v1462, 1
    %v1521 = vsel %vm370, %v1519, %v1520
    %v1522 = vrot.slane %v1447, 1
    %v1523 = vrot.slane %v1463, 1
    %v1524 = vsel %vm370, %v1522, %v1523
    %v1525 = vrot.slane %v1448, 1
    %v1526 = vrot.slane %v1464, 1
    %v1527 = vsel %vm370, %v1525, %v1526
    %v1528 = vrot.slane %v1449, 1
    %v1529 = vrot.slane %v1465, 1
    %v1530 = vsel %vm370, %v1528, %v1529
    %v1531 = vrot.slane %v1450, 1
    %v1532 = vrot.slane %v1466, 1
    %v1533 = vsel %vm370, %v1531, %v1532
    %v1534 = vrot.slane %v1451, 1
    %v1535 = vrot.slane %v1467, 1
    %v1536 = vsel %vm370, %v1534, %v1535
    %v1537 = vrot.slane %v1452, 1
    %v1538 = vrot.slane %v1468, 1
    %v1539 = vsel %vm370, %v1537, %v1538
    %1540 = vrot.lane.b32.xlu0 %v1500, 8
    %v1541 = vpop.permute.xlu0 %1540
    %1542 = vrot.lane.b32.xlu0 %v1503, 8
    %v1543 = vpop.permute.xlu0 %1542
    %1544 = vrot.lane.b32.xlu0 %v1506, 8
    %v1545 = vpop.permute.xlu0 %1544
    %1546 = vrot.lane.b32.xlu0 %v1509, 8
    %v1547 = vpop.permute.xlu0 %1546
    %1548 = vrot.lane.b32.xlu0 %v1512, 8
    %v1549 = vpop.permute.xlu0 %1548
    %1550 = vrot.lane.b32.xlu0 %v1515, 8
    %v1551 = vpop.permute.xlu0 %1550
    %1552 = vrot.lane.b32.xlu0 %v1518, 8
    %v1553 = vpop.permute.xlu0 %1552
    %1554 = vrot.lane.b32.xlu0 %v1521, 8
    %v1555 = vpop.permute.xlu0 %1554
    %1556 = vrot.lane.b32.xlu0 %v1524, 8
    %v1557 = vpop.permute.xlu0 %1556
    %1558 = vrot.lane.b32.xlu0 %v1527, 8
    %v1559 = vpop.permute.xlu0 %1558
    %1560 = vrot.lane.b32.xlu0 %v1530, 8
    %v1561 = vpop.permute.xlu0 %1560
    %1562 = vrot.lane.b32.xlu0 %v1533, 8
    %v1563 = vpop.permute.xlu0 %1562
    %1564 = vrot.lane.b32.xlu0 %v1536, 8
    %v1565 = vpop.permute.xlu0 %1564
    %1566 = vrot.lane.b32.xlu0 %v1539, 8
    %v1567 = vpop.permute.xlu0 %1566
    %v1582 = vrot.slane %v1438, 2
    %v1583 = vrot.slane %v1454, 2
    %v1584 = vsel %vm455, %v1582, %v1583
    %v1585 = vrot.slane %v1439, 2
    %v1586 = vrot.slane %v1455, 2
    %v1587 = vsel %vm455, %v1585, %v1586
    %v1588 = vrot.slane %v1440, 2
    %v1589 = vrot.slane %v1456, 2
    %v1590 = vsel %vm455, %v1588, %v1589
    %v1591 = vrot.slane %v1441, 2
    %v1592 = vrot.slane %v1457, 2
    %v1593 = vsel %vm455, %v1591, %v1592
    %v1594 = vrot.slane %v1442, 2
    %v1595 = vrot.slane %v1458, 2
    %v1596 = vsel %vm455, %v1594, %v1595
    %v1597 = vrot.slane %v1443, 2
    %v1598 = vrot.slane %v1459, 2
    %v1599 = vsel %vm455, %v1597, %v1598
    %v1600 = vrot.slane %v1444, 2
    %v1601 = vrot.slane %v1460, 2
    %v1602 = vsel %vm455, %v1600, %v1601
    %v1603 = vrot.slane %v1446, 2
    %v1604 = vrot.slane %v1462, 2
    %v1605 = vsel %vm455, %v1603, %v1604
    %v1606 = vrot.slane %v1447, 2
    %v1607 = vrot.slane %v1463, 2
    %v1608 = vsel %vm455, %v1606, %v1607
    %v1609 = vrot.slane %v1448, 2
    %v1610 = vrot.slane %v1464, 2
    %v1611 = vsel %vm455, %v1609, %v1610
    %v1612 = vrot.slane %v1449, 2
    %v1613 = vrot.slane %v1465, 2
    %v1614 = vsel %vm455, %v1612, %v1613
    %v1615 = vrot.slane %v1450, 2
    %v1616 = vrot.slane %v1466, 2
    %v1617 = vsel %vm455, %v1615, %v1616
    %v1618 = vrot.slane %v1451, 2
    %v1619 = vrot.slane %v1467, 2
    %v1620 = vsel %vm455, %v1618, %v1619
    %v1621 = vrot.slane %v1452, 2
    %v1622 = vrot.slane %v1468, 2
    %v1623 = vsel %vm455, %v1621, %v1622
    %1624 = vrot.lane.b32.xlu0 %v1584, 16
    %v1625 = vpop.permute.xlu0 %1624
    %1626 = vrot.lane.b32.xlu0 %v1587, 16
    %v1627 = vpop.permute.xlu0 %1626
    %1628 = vrot.lane.b32.xlu0 %v1590, 16
    %v1629 = vpop.permute.xlu0 %1628
    %1630 = vrot.lane.b32.xlu0 %v1593, 16
    %v1631 = vpop.permute.xlu0 %1630
    %1632 = vrot.lane.b32.xlu0 %v1596, 16
    %v1633 = vpop.permute.xlu0 %1632
    %1634 = vrot.lane.b32.xlu0 %v1599, 16
    %v1635 = vpop.permute.xlu0 %1634
    %1636 = vrot.lane.b32.xlu0 %v1602, 16
    %v1637 = vpop.permute.xlu0 %1636
    %1638 = vrot.lane.b32.xlu0 %v1605, 16
    %v1639 = vpop.permute.xlu0 %1638
    %1640 = vrot.lane.b32.xlu0 %v1608, 16
    %v1641 = vpop.permute.xlu0 %1640
    %1642 = vrot.lane.b32.xlu0 %v1611, 16
    %v1643 = vpop.permute.xlu0 %1642
    %1644 = vrot.lane.b32.xlu0 %v1614, 16
    %v1645 = vpop.permute.xlu0 %1644
    %1646 = vrot.lane.b32.xlu0 %v1617, 16
    %v1647 = vpop.permute.xlu0 %1646
    %1648 = vrot.lane.b32.xlu0 %v1620, 16
    %v1649 = vpop.permute.xlu0 %1648
    %1650 = vrot.lane.b32.xlu0 %v1623, 16
    %v1651 = vpop.permute.xlu0 %1650
    %1668 = vrot.lane.b32.xlu0 %v1439, 24
    %v1669 = vpop.permute.xlu0 %1668
    %1670 = vrot.lane.b32.xlu0 %v1438, 24
    %v1671 = vpop.permute.xlu0 %1670
    %1672 = vrot.lane.b32.xlu0 %v1440, 24
    %v1673 = vpop.permute.xlu0 %1672
    %1674 = vrot.lane.b32.xlu0 %v1441, 24
    %v1675 = vpop.permute.xlu0 %1674
    %1676 = vrot.lane.b32.xlu0 %v1442, 24
    %v1677 = vpop.permute.xlu0 %1676
    %1678 = vrot.lane.b32.xlu0 %v1443, 24
    %v1679 = vpop.permute.xlu0 %1678
    %1680 = vrot.lane.b32.xlu0 %v1444, 24
    %v1681 = vpop.permute.xlu0 %1680
    %1682 = vrot.lane.b32.xlu0 %v1445, 24
    %v1683 = vpop.permute.xlu0 %1682
    %1684 = vrot.lane.b32.xlu0 %v1447, 24
    %v1685 = vpop.permute.xlu0 %1684
    %1686 = vrot.lane.b32.xlu0 %v1446, 24
    %v1687 = vpop.permute.xlu0 %1686
    %1688 = vrot.lane.b32.xlu0 %v1448, 24
    %v1689 = vpop.permute.xlu0 %1688
    %1690 = vrot.lane.b32.xlu0 %v1449, 24
    %v1691 = vpop.permute.xlu0 %1690
    %1692 = vrot.lane.b32.xlu0 %v1450, 24
    %v1693 = vpop.permute.xlu0 %1692
    %1694 = vrot.lane.b32.xlu0 %v1451, 24
    %v1695 = vpop.permute.xlu0 %1694
    %1696 = vrot.lane.b32.xlu0 %v1452, 24
    %v1697 = vpop.permute.xlu0 %1696
    %1698 = vrot.lane.b32.xlu0 %v1453, 24
    %v1699 = vpop.permute.xlu0 %1698
    %v1718 = vrot.slane %v1445, 1
    %v1719 = vrot.slane %v1461, 1
    %v1720 = vsel %vm370, %v1718, %v1719
    %v1721 = vrot.slane %v1453, 1
    %v1722 = vrot.slane %v1469, 1
    %v1723 = vsel %vm370, %v1721, %v1722
    %1724 = vrot.lane.b32.xlu0 %v1503, 32
    %v1725 = vpop.permute.xlu0 %1724
    %1726 = vrot.lane.b32.xlu0 %v1500, 32
    %v1727 = vpop.permute.xlu0 %1726
    %1728 = vrot.lane.b32.xlu0 %v1506, 32
    %v1729 = vpop.permute.xlu0 %1728
    %1730 = vrot.lane.b32.xlu0 %v1509, 32
    %v1731 = vpop.permute.xlu0 %1730
    %1732 = vrot.lane.b32.xlu0 %v1512, 32
    %v1733 = vpop.permute.xlu0 %1732
    %1734 = vrot.lane.b32.xlu0 %v1515, 32
    %v1735 = vpop.permute.xlu0 %1734
    %1736 = vrot.lane.b32.xlu0 %v1518, 32
    %v1737 = vpop.permute.xlu0 %1736
    %1738 = vrot.lane.b32.xlu0 %v1720, 32
    %v1739 = vpop.permute.xlu0 %1738
    %1740 = vrot.lane.b32.xlu0 %v1524, 32
    %v1741 = vpop.permute.xlu0 %1740
    %1742 = vrot.lane.b32.xlu0 %v1521, 32
    %v1743 = vpop.permute.xlu0 %1742
    %1744 = vrot.lane.b32.xlu0 %v1527, 32
    %v1745 = vpop.permute.xlu0 %1744
    %1746 = vrot.lane.b32.xlu0 %v1530, 32
    %v1747 = vpop.permute.xlu0 %1746
    %1748 = vrot.lane.b32.xlu0 %v1533, 32
    %v1749 = vpop.permute.xlu0 %1748
    %1750 = vrot.lane.b32.xlu0 %v1536, 32
    %v1751 = vpop.permute.xlu0 %1750
    %1752 = vrot.lane.b32.xlu0 %v1539, 32
    %v1753 = vpop.permute.xlu0 %1752
    %1754 = vrot.lane.b32.xlu0 %v1723, 32
    %v1755 = vpop.permute.xlu0 %1754
    %v1772 = vrot.slane %v1445, 2
    %v1773 = vrot.slane %v1461, 2
    %v1774 = vsel %vm455, %v1772, %v1773
    %v1775 = vrot.slane %v1453, 2
    %v1776 = vrot.slane %v1469, 2
    %v1777 = vsel %vm455, %v1775, %v1776
    %1778 = vrot.lane.b32.xlu0 %v1587, 40
    %v1779 = vpop.permute.xlu0 %1778
    %1780 = vrot.lane.b32.xlu0 %v1584, 40
    %v1781 = vpop.permute.xlu0 %1780
    %1782 = vrot.lane.b32.xlu0 %v1590, 40
    %v1783 = vpop.permute.xlu0 %1782
    %1784 = vrot.lane.b32.xlu0 %v1593, 40
    %v1785 = vpop.permute.xlu0 %1784
    %1786 = vrot.lane.b32.xlu0 %v1596, 40
    %v1787 = vpop.permute.xlu0 %1786
    %1788 = vrot.lane.b32.xlu0 %v1599, 40
    %v1789 = vpop.permute.xlu0 %1788
    %1790 = vrot.lane.b32.xlu0 %v1602, 40
    %v1791 = vpop.permute.xlu0 %1790
    %1792 = vrot.lane.b32.xlu0 %v1774, 40
    %v1793 = vpop.permute.xlu0 %1792
    %1794 = vrot.lane.b32.xlu0 %v1608, 40
    %v1795 = vpop.permute.xlu0 %1794
    %1796 = vrot.lane.b32.xlu0 %v1605, 40
    %v1797 = vpop.permute.xlu0 %1796
    %1798 = vrot.lane.b32.xlu0 %v1611, 40
    %v1799 = vpop.permute.xlu0 %1798
    %1800 = vrot.lane.b32.xlu0 %v1614, 40
    %v1801 = vpop.permute.xlu0 %1800
    %1802 = vrot.lane.b32.xlu0 %v1617, 40
    %v1803 = vpop.permute.xlu0 %1802
    %1804 = vrot.lane.b32.xlu0 %v1620, 40
    %v1805 = vpop.permute.xlu0 %1804
    %1806 = vrot.lane.b32.xlu0 %v1623, 40
    %v1807 = vpop.permute.xlu0 %1806
    %1808 = vrot.lane.b32.xlu0 %v1777, 40
    %v1809 = vpop.permute.xlu0 %1808
    %1826 = vrot.lane.b32.xlu0 %v1438, 48
    %v1827 = vpop.permute.xlu0 %1826
    %1828 = vrot.lane.b32.xlu0 %v1440, 48
    %v1829 = vpop.permute.xlu0 %1828
    %1830 = vrot.lane.b32.xlu0 %v1441, 48
    %v1831 = vpop.permute.xlu0 %1830
    %1832 = vrot.lane.b32.xlu0 %v1442, 48
    %v1833 = vpop.permute.xlu0 %1832
    %1834 = vrot.lane.b32.xlu0 %v1443, 48
    %v1835 = vpop.permute.xlu0 %1834
    %1836 = vrot.lane.b32.xlu0 %v1444, 48
    %v1837 = vpop.permute.xlu0 %1836
    %1838 = vrot.lane.b32.xlu0 %v1445, 48
    %v1839 = vpop.permute.xlu0 %1838
    %1840 = vrot.lane.b32.xlu0 %v1446, 48
    %v1841 = vpop.permute.xlu0 %1840
    %1842 = vrot.lane.b32.xlu0 %v1448, 48
    %v1843 = vpop.permute.xlu0 %1842
    %1844 = vrot.lane.b32.xlu0 %v1449, 48
    %v1845 = vpop.permute.xlu0 %1844
    %1846 = vrot.lane.b32.xlu0 %v1450, 48
    %v1847 = vpop.permute.xlu0 %1846
    %1848 = vrot.lane.b32.xlu0 %v1451, 48
    %v1849 = vpop.permute.xlu0 %1848
    %1850 = vrot.lane.b32.xlu0 %v1452, 48
    %v1851 = vpop.permute.xlu0 %1850
    %1852 = vrot.lane.b32.xlu0 %v1453, 48
    %v1853 = vpop.permute.xlu0 %1852
    %1868 = vrot.lane.b32.xlu0 %v1500, 56
    %v1869 = vpop.permute.xlu0 %1868
    %1870 = vrot.lane.b32.xlu0 %v1506, 56
    %v1871 = vpop.permute.xlu0 %1870
    %1872 = vrot.lane.b32.xlu0 %v1509, 56
    %v1873 = vpop.permute.xlu0 %1872
    %1874 = vrot.lane.b32.xlu0 %v1512, 56
    %v1875 = vpop.permute.xlu0 %1874
    %1876 = vrot.lane.b32.xlu0 %v1515, 56
    %v1877 = vpop.permute.xlu0 %1876
    %1878 = vrot.lane.b32.xlu0 %v1518, 56
    %v1879 = vpop.permute.xlu0 %1878
    %1880 = vrot.lane.b32.xlu0 %v1720, 56
    %v1881 = vpop.permute.xlu0 %1880
    %1882 = vrot.lane.b32.xlu0 %v1521, 56
    %v1883 = vpop.permute.xlu0 %1882
    %1884 = vrot.lane.b32.xlu0 %v1527, 56
    %v1885 = vpop.permute.xlu0 %1884
    %1886 = vrot.lane.b32.xlu0 %v1530, 56
    %v1887 = vpop.permute.xlu0 %1886
    %1888 = vrot.lane.b32.xlu0 %v1533, 56
    %v1889 = vpop.permute.xlu0 %1888
    %1890 = vrot.lane.b32.xlu0 %v1536, 56
    %v1891 = vpop.permute.xlu0 %1890
    %1892 = vrot.lane.b32.xlu0 %v1539, 56
    %v1893 = vpop.permute.xlu0 %1892
    %1894 = vrot.lane.b32.xlu0 %v1723, 56
    %v1895 = vpop.permute.xlu0 %1894
    %1910 = vrot.lane.b32.xlu0 %v1584, 64
    %v1911 = vpop.permute.xlu0 %1910
    %1912 = vrot.lane.b32.xlu0 %v1590, 64
    %v1913 = vpop.permute.xlu0 %1912
    %1914 = vrot.lane.b32.xlu0 %v1593, 64
    %v1915 = vpop.permute.xlu0 %1914
    %1916 = vrot.lane.b32.xlu0 %v1596, 64
    %v1917 = vpop.permute.xlu0 %1916
    %1918 = vrot.lane.b32.xlu0 %v1599, 64
    %v1919 = vpop.permute.xlu0 %1918
    %1920 = vrot.lane.b32.xlu0 %v1602, 64
    %v1921 = vpop.permute.xlu0 %1920
    %1922 = vrot.lane.b32.xlu0 %v1774, 64
    %v1923 = vpop.permute.xlu0 %1922
    %1924 = vrot.lane.b32.xlu0 %v1605, 64
    %v1925 = vpop.permute.xlu0 %1924
    %1926 = vrot.lane.b32.xlu0 %v1611, 64
    %v1927 = vpop.permute.xlu0 %1926
    %1928 = vrot.lane.b32.xlu0 %v1614, 64
    %v1929 = vpop.permute.xlu0 %1928
    %1930 = vrot.lane.b32.xlu0 %v1617, 64
    %v1931 = vpop.permute.xlu0 %1930
    %1932 = vrot.lane.b32.xlu0 %v1620, 64
    %v1933 = vpop.permute.xlu0 %1932
    %1934 = vrot.lane.b32.xlu0 %v1623, 64
    %v1935 = vpop.permute.xlu0 %1934
    %1936 = vrot.lane.b32.xlu0 %v1777, 64
    %v1937 = vpop.permute.xlu0 %1936
    %v1952 = vsel %vm840, %v1438, %v1541
    %v1953 = vsel %vm840, %v1439, %v1543
    %v1954 = vsel %vm840, %v1440, %v1545
    %v1955 = vsel %vm840, %v1441, %v1547
    %v1956 = vsel %vm840, %v1442, %v1549
    %v1957 = vsel %vm840, %v1443, %v1551
    %v1958 = vsel %vm840, %v1444, %v1553
    %v1959 = vsel %vm840, %v1446, %v1555
    %v1960 = vsel %vm840, %v1447, %v1557
    %v1961 = vsel %vm840, %v1448, %v1559
    %v1962 = vsel %vm840, %v1449, %v1561
    %v1963 = vsel %vm840, %v1450, %v1563
    %v1964 = vsel %vm840, %v1451, %v1565
    %v1965 = vsel %vm840, %v1452, %v1567
    %v1966 = vsel %vm872, %v1952, %v1625
    %v1967 = vsel %vm872, %v1953, %v1627
    %v1968 = vsel %vm872, %v1954, %v1629
    %v1969 = vsel %vm872, %v1955, %v1631
    %v1970 = vsel %vm872, %v1956, %v1633
    %v1971 = vsel %vm872, %v1957, %v1635
    %v1972 = vsel %vm872, %v1958, %v1637
    %v1973 = vsel %vm872, %v1959, %v1639
    %v1974 = vsel %vm872, %v1960, %v1641
    %v1975 = vsel %vm872, %v1961, %v1643
    %v1976 = vsel %vm872, %v1962, %v1645
    %v1977 = vsel %vm872, %v1963, %v1647
    %v1978 = vsel %vm872, %v1964, %v1649
    %v1979 = vsel %vm872, %v1965, %v1651
    %v1980 = vsel %vm906, %v1966, %v1669
    %v1981 = vsel %vm906, %v1967, %v1671
    %v1982 = vsel %vm906, %v1966, %v1673
    %v1983 = vsel %vm906, %v1968, %v1675
    %v1984 = vsel %vm906, %v1969, %v1677
    %v1985 = vsel %vm906, %v1970, %v1679
    %v1986 = vsel %vm906, %v1971, %v1681
    %v1987 = vsel %vm906, %v1972, %v1683
    %v1988 = vsel %vm906, %v1973, %v1685
    %v1989 = vsel %vm906, %v1974, %v1687
    %v1990 = vsel %vm906, %v1973, %v1689
    %v1991 = vsel %vm906, %v1975, %v1691
    %v1992 = vsel %vm906, %v1976, %v1693
    %v1993 = vsel %vm906, %v1977, %v1695
    %v1994 = vsel %vm906, %v1978, %v1697
    %v1995 = vsel %vm906, %v1979, %v1699
    %v1996 = vsel %vm940, %v1980, %v1725
    %v1997 = vsel %vm940, %v1981, %v1727
    %v1998 = vsel %vm940, %v1982, %v1729
    %v1999 = vsel %vm940, %v1983, %v1731
    %v2000 = vsel %vm940, %v1984, %v1733
    %v2001 = vsel %vm940, %v1985, %v1735
    %v2002 = vsel %vm940, %v1986, %v1737
    %v2003 = vsel %vm940, %v1987, %v1739
    %v2004 = vsel %vm940, %v1988, %v1741
    %v2005 = vsel %vm940, %v1989, %v1743
    %v2006 = vsel %vm940, %v1990, %v1745
    %v2007 = vsel %vm940, %v1991, %v1747
    %v2008 = vsel %vm940, %v1992, %v1749
    %v2009 = vsel %vm940, %v1993, %v1751
    %v2010 = vsel %vm940, %v1994, %v1753
    %v2011 = vsel %vm940, %v1995, %v1755
    %vm2012 = vcmask 326656
    %v2013 = vsel %vm2012, %v1996, %v1779
    %v2014 = vsel %vm2012, %v1997, %v1781
    %v2015 = vsel %vm2012, %v1998, %v1783
    %v2016 = vsel %vm2012, %v1999, %v1785
    %v2017 = vsel %vm2012, %v2000, %v1787
    %v2018 = vsel %vm2012, %v2001, %v1789
    %v2019 = vsel %vm2012, %v2002, %v1791
    %v2020 = vsel %vm2012, %v2003, %v1793
    %v2021 = vsel %vm2012, %v2004, %v1795
    %v2022 = vsel %vm2012, %v2005, %v1797
    %v2023 = vsel %vm2012, %v2006, %v1799
    %v2024 = vsel %vm2012, %v2007, %v1801
    %v2025 = vsel %vm2012, %v2008, %v1803
    %v2026 = vsel %vm2012, %v2009, %v1805
    %v2027 = vsel %vm2012, %v2010, %v1807
    %v2028 = vsel %vm2012, %v2011, %v1809
    %vm2029 = vcmask 392192
    %v2030 = vsel %vm2029, %v2013, %v1827
    %v2031 = vsel %vm2029, %v2014, %v1829
    %v2032 = vsel %vm2029, %v2015, %v1831
    %v2033 = vsel %vm2029, %v2016, %v1833
    %v2034 = vsel %vm2029, %v2017, %v1835
    %v2035 = vsel %vm2029, %v2018, %v1837
    %v2036 = vsel %vm2029, %v2019, %v1839
    %v2037 = vsel %vm2029, %v2020, %v1837
    %v2038 = vsel %vm2029, %v2021, %v1841
    %v2039 = vsel %vm2029, %v2022, %v1843
    %v2040 = vsel %vm2029, %v2023, %v1845
    %v2041 = vsel %vm2029, %v2024, %v1847
    %v2042 = vsel %vm2029, %v2025, %v1849
    %v2043 = vsel %vm2029, %v2026, %v1851
    %v2044 = vsel %vm2029, %v2027, %v1853
    %v2045 = vsel %vm2029, %v2028, %v1851
    %vm2046 = vcmask 457728
    %v2047 = vsel %vm2046, %v2030, %v1869
    %v2048 = vsel %vm2046, %v2031, %v1871
    %v2049 = vsel %vm2046, %v2032, %v1873
    %v2050 = vsel %vm2046, %v2033, %v1875
    %v2051 = vsel %vm2046, %v2034, %v1877
    %v2052 = vsel %vm2046, %v2035, %v1879
    %v2053 = vsel %vm2046, %v2036, %v1881
    %v2054 = vsel %vm2046, %v2037, %v1879
    %v2055 = vsel %vm2046, %v2038, %v1883
    %v2056 = vsel %vm2046, %v2039, %v1885
    %v2057 = vsel %vm2046, %v2040, %v1887
    %v2058 = vsel %vm2046, %v2041, %v1889
    %v2059 = vsel %vm2046, %v2042, %v1891
    %v2060 = vsel %vm2046, %v2043, %v1893
    %v2061 = vsel %vm2046, %v2044, %v1895
    %v2062 = vsel %vm2046, %v2045, %v1893
    %vm2063 = vcmask 523264
    %v2064 = vsel %vm2063, %v2047, %v1911
    %v2065 = vsel %vm2063, %v2048, %v1913
    %v2066 = vsel %vm2063, %v2049, %v1915
    %v2067 = vsel %vm2063, %v2050, %v1917
    %v2068 = vsel %vm2063, %v2051, %v1919
    %v2069 = vsel %vm2063, %v2052, %v1921
    %v2070 = vsel %vm2063, %v2053, %v1923
    %v2071 = vsel %vm2063, %v2054, %v1921
    %v2072 = vsel %vm2063, %v2055, %v1925
    %v2073 = vsel %vm2063, %v2056, %v1927
    %v2074 = vsel %vm2063, %v2057, %v1929
    %v2075 = vsel %vm2063, %v2058, %v1931
    %v2076 = vsel %vm2063, %v2059, %v1933
    %v2077 = vsel %vm2063, %v2060, %v1935
    %v2078 = vsel %vm2063, %v2061, %v1937
    %v2079 = vsel %vm2063, %v2062, %v1935
    %vm2080 = vcmask 588800
    %v2082 = vsel %vm2080, %v2064, 0
    %v2085 = vsel %vm2080, %v2065, 0
    %v2088 = vsel %vm2080, %v2066, 0
    %v2091 = vsel %vm2080, %v2067, 0
    %v2094 = vsel %vm2080, %v2068, 0
    %v2097 = vsel %vm2080, %v2069, 0
    %v2100 = vsel %vm2080, %v2070, 0
    %v2103 = vsel %vm2080, %v2071, 0
    %v2106 = vsel %vm2080, %v2072, 0
    %v2109 = vsel %vm2080, %v2073, 0
    %v2112 = vsel %vm2080, %v2074, 0
    %v2115 = vsel %vm2080, %v2075, 0
    %v2118 = vsel %vm2080, %v2076, 0
    %v2121 = vsel %vm2080, %v2077, 0
    %v2124 = vsel %vm2080, %v2078, 0
    %v2127 = vsel %vm2080, %v2079, 0
    %2129 = vmatprep.subr.mxu0 0.0
    %2130 = vmatpush1.msra.mxu0 %v1317
    %2131 = vmatprep.subr.mxu0 0.0
    %2132 = vmatpush1.msra.mxu0 %v1318
    %2133 = vmatprep.subr.mxu0 0.0
    %2134 = vmatpush1.msra.mxu0 %v1319
    %2135 = vmatprep.subr.mxu0 0.0
    %2136 = vmatpush1.msra.mxu0 %v1320
    %2137 = vmatprep.subr.mxu0 0.0
    %2138 = vmatpush1.msra.mxu0 %v1321
    %2139 = vmatprep.subr.mxu0 0.0
    %2140 = vmatpush1.msra.mxu0 %v1322
    %2141 = vmatprep.subr.mxu0 0.0
    %2142 = vmatpush1.msra.mxu0 %v1323
    %2143 = vmatprep.subr.mxu0 0.0
    %2144 = vmatpush1.msra.mxu0 %v1324
    %2145 = vmatprep.subr.mxu0 0.0
    %2146 = vmatpush1.msra.mxu0 %v1325
    %2147 = vmatprep.subr.mxu0 0.0
    %2148 = vmatpush1.msra.mxu0 0.0
    %2149 = vmatprep.subr.mxu0 0.0
    %2150 = vmatpush1.msra.mxu0 0.0
    %2151 = vmatprep.subr.mxu0 0.0
    %2152 = vmatpush1.msra.mxu0 0.0
    %2153 = vmatprep.subr.mxu0 0.0
    %2154 = vmatpush1.msra.mxu0 0.0
    %2155 = vmatprep.subr.mxu0 0.0
    %2156 = vmatpush1.msra.mxu0 0.0
    %2157 = vmatprep.subr.mxu0 0.0
    %2158 = vmatpush1.msra.mxu0 0.0
    %2159 = vmatprep.subr.mxu0 0.0
    %2160 = vmatpush1.msra.mxu0 0.0
    %2161 = vmatprep.subr.mxu0 0.0
    %2162 = vmatpush1.msra.mxu0 0.0
    %2163 = vmatprep.subr.mxu0 0.0
    %2164 = vmatpush1.msra.mxu0 0.0
    %2165 = vmatprep.subr.mxu0 0.0
    %2166 = vmatpush1.msra.mxu0 0.0
    %2167 = vmatprep.subr.mxu0 0.0
    %2168 = vmatpush1.msra.mxu0 0.0
    %2169 = vmatprep.subr.mxu0 0.0
    %2170 = vmatpush1.msra.mxu0 0.0
    %2171 = vmatprep.subr.mxu0 0.0
    %2172 = vmatpush1.msra.mxu0 0.0
    %2173 = vmatprep.subr.mxu0 0.0
    %2174 = vmatpush1.msra.mxu0 0.0
    %2175 = vmatprep.subr.mxu0 0.0
    %2176 = vmatpush1.msra.mxu0 0.0
    %2177 = vmatprep.subr.mxu0 0.0
    %2178 = vmatpush1.msra.mxu0 0.0
    %2179 = vmatprep.subr.mxu0 0.0
    %2180 = vmatpush1.msra.mxu0 0.0
    %2181 = vmatprep.subr.mxu0 0.0
    %2182 = vmatpush1.msra.mxu0 0.0
    %2183 = vmatprep.subr.mxu0 0.0
    %2184 = vmatpush1.msra.mxu0 0.0
    %2185 = vmatprep.subr.mxu0 0.0
    %2186 = vmatpush1.msra.mxu0 0.0
    %2187 = vmatprep.subr.mxu0 0.0
    %2188 = vmatpush1.msra.mxu0 0.0
    %2189 = vmatprep.subr.mxu0 0.0
    %2190 = vmatpush1.msra.mxu0 0.0
    %2191 = vmatprep.subr.mxu0 0.0
    %2192 = vmatpush1.msra.mxu0 0.0
    %2193 = vmatprep.mubr.f32.mxu0 0.0
    %2194 = vmatmul.mubr.f32.gmra.mrb[0].mxu0 %v2082
    %v2195 = vpop.f32.mrb[0].mxu0
    %v2196 = vadd.f32 0.0, %v2195
    %v2197 = vpop.f32.mrb[0].mxu0
    %2198 = vmatprep.mubr.f32.mxu0 0.0
    %2199 = vmatmul.mubr.f32.gmra.mrb[0].mxu0 %v2085
    %v2200 = vpop.f32.mrb[0].mxu0
    %v2201 = vadd.f32 0.0, %v2200
    %v2202 = vpop.f32.mrb[0].mxu0
    %2203 = vmatprep.mubr.f32.mxu0 0.0
    %2204 = vmatmul.mubr.f32.gmra.mrb[0].mxu0 %v2088
    %v2205 = vpop.f32.mrb[0].mxu0
    %v2206 = vadd.f32 0.0, %v2205
    %v2207 = vpop.f32.mrb[0].mxu0
    %2208 = vmatprep.mubr.f32.mxu0 0.0
    %2209 = vmatmul.mubr.f32.gmra.mrb[0].mxu0 %v2091
    %v2210 = vpop.f32.mrb[0].mxu0
    %v2211 = vadd.f32 0.0, %v2210
    %v2212 = vpop.f32.mrb[0].mxu0
    %2213 = vmatprep.mubr.f32.mxu0 0.0
    %2214 = vmatmul.mubr.f32.gmra.mrb[0].mxu0 %v2094
    %v2215 = vpop.f32.mrb[0].mxu0
    %v2216 = vadd.f32 0.0, %v2215
    %v2217 = vpop.f32.mrb[0].mxu0
    %2218 = vmatprep.mubr.f32.mxu0 0.0
    %2219 = vmatmul.mubr.f32.gmra.mrb[0].mxu0 %v2097
    %v2220 = vpop.f32.mrb[0].mxu0
    %v2221 = vadd.f32 0.0, %v2220
    %v2222 = vpop.f32.mrb[0].mxu0
    %2223 = vmatprep.mubr.f32.mxu0 0.0
    %2224 = vmatmul.mubr.f32.gmra.mrb[0].mxu0 %v2100
    %v2225 = vpop.f32.mrb[0].mxu0
    %v2226 = vadd.f32 0.0, %v2225
    %v2227 = vpop.f32.mrb[0].mxu0
    %2228 = vmatprep.mubr.f32.mxu0 0.0
    %2229 = vmatmul.mubr.f32.gmra.mrb[0].mxu0 %v2103
    %v2230 = vpop.f32.mrb[0].mxu0
    %v2231 = vadd.f32 0.0, %v2230
    %v2232 = vpop.f32.mrb[0].mxu0
    %2233 = vmatprep.mubr.f32.mxu0 0.0
    %2234 = vmatmul.mubr.f32.gmra.mrb[0].mxu0 %v2106
    %v2235 = vpop.f32.mrb[0].mxu0
    %v2236 = vadd.f32 0.0, %v2235
    %v2237 = vpop.f32.mrb[0].mxu0
    %2238 = vmatprep.mubr.f32.mxu0 0.0
    %2239 = vmatmul.mubr.f32.gmra.mrb[0].mxu0 %v2109
    %v2240 = vpop.f32.mrb[0].mxu0
    %v2241 = vadd.f32 0.0, %v2240
    %v2242 = vpop.f32.mrb[0].mxu0
    %2243 = vmatprep.mubr.f32.mxu0 0.0
    %2244 = vmatmul.mubr.f32.gmra.mrb[0].mxu0 %v2112
    %v2245 = vpop.f32.mrb[0].mxu0
    %v2246 = vadd.f32 0.0, %v2245
    %v2247 = vpop.f32.mrb[0].mxu0
    %2248 = vmatprep.mubr.f32.mxu0 0.0
    %2249 = vmatmul.mubr.f32.gmra.mrb[0].mxu0 %v2115
    %v2250 = vpop.f32.mrb[0].mxu0
    %v2251 = vadd.f32 0.0, %v2250
    %v2252 = vpop.f32.mrb[0].mxu0
    %2253 = vmatprep.mubr.f32.mxu0 0.0
    %2254 = vmatmul.mubr.f32.gmra.mrb[0].mxu0 %v2118
    %v2255 = vpop.f32.mrb[0].mxu0
    %v2256 = vadd.f32 0.0, %v2255
    %v2257 = vpop.f32.mrb[0].mxu0
    %2258 = vmatprep.mubr.f32.mxu0 0.0
    %2259 = vmatmul.mubr.f32.gmra.mrb[0].mxu0 %v2121
    %v2260 = vpop.f32.mrb[0].mxu0
    %v2261 = vadd.f32 0.0, %v2260
    %v2262 = vpop.f32.mrb[0].mxu0
    %2263 = vmatprep.mubr.f32.mxu0 0.0
    %2264 = vmatmul.mubr.f32.gmra.mrb[0].mxu0 %v2124
    %v2265 = vpop.f32.mrb[0].mxu0
    %v2266 = vadd.f32 0.0, %v2265
    %v2267 = vpop.f32.mrb[0].mxu0
    %2268 = vmatprep.mubr.f32.mxu0 0.0
    %2269 = vmatmul.mubr.f32.gmra.mrb[0].mxu0 %v2127
    %v2270 = vpop.f32.mrb[0].mxu0
    %v2271 = vadd.f32 0.0, %v2270
    %v2272 = vpop.f32.mrb[0].mxu0
    %2273 = vdwg.mxu0
    %v2274 = vsel %vm840, %v2196, 0.0
    %v2275 = vsel %vm840, %v2201, 0.0
    %v2276 = vadd.f32 %v2274, %v2275
    %v2277 = vsel %vm840, %v2206, 0.0
    %v2278 = vadd.f32 %v2276, %v2277
    %v2279 = vsel %vm840, %v2211, 0.0
    %v2280 = vadd.f32 %v2278, %v2279
    %v2281 = vsel %vm840, %v2216, 0.0
    %v2282 = vadd.f32 %v2280, %v2281
    %v2283 = vsel %vm840, %v2221, 0.0
    %v2284 = vadd.f32 %v2282, %v2283
    %v2285 = vsel %vm840, %v2226, 0.0
    %v2286 = vadd.f32 %v2284, %v2285
    %v2287 = vsel %vm840, %v2231, 0.0
    %v2288 = vadd.f32 %v2286, %v2287
    %v2289 = vrot.slane %v2288, 4
    %v2290 = vadd.f32 %v2288, %v2289
    %v2291 = vrot.slane %v2290, 2
    %v2292 = vadd.f32 %v2290, %v2291
    %v2293 = vrot.slane %v2292, 1
    %v2294 = vadd.f32 %v2292, %v2293
    %v2295 = vsel %vm840, %v2236, 0.0
    %v2296 = vsel %vm840, %v2241, 0.0
    %v2297 = vadd.f32 %v2295, %v2296
    %v2298 = vsel %vm840, %v2246, 0.0
    %v2299 = vadd.f32 %v2297, %v2298
    %v2300 = vsel %vm840, %v2251, 0.0
    %v2301 = vadd.f32 %v2299, %v2300
    %v2302 = vsel %vm840, %v2256, 0.0
    %v2303 = vadd.f32 %v2301, %v2302
    %v2304 = vsel %vm840, %v2261, 0.0
    %v2305 = vadd.f32 %v2303, %v2304
    %v2306 = vsel %vm840, %v2266, 0.0
    %v2307 = vadd.f32 %v2305, %v2306
    %v2308 = vsel %vm840, %v2271, 0.0
    %v2309 = vadd.f32 %v2307, %v2308
    %v2310 = vrot.slane %v2309, 4
    %v2311 = vadd.f32 %v2309, %v2310
    %v2312 = vrot.slane %v2311, 2
    %v2313 = vadd.f32 %v2311, %v2312
    %v2314 = vrot.slane %v2313, 1
    %v2315 = vadd.f32 %v2313, %v2314
    %v2316 = vmul.f32 %v2294, 0.015625
    %v2317 = vmul.f32 %v2315, 0.015625
    %v2318 = vmul.f32 %v2196, %v2196
    %v2319 = vmul.f32 %v2201, %v2201
    %v2320 = vmul.f32 %v2206, %v2206
    %v2321 = vmul.f32 %v2211, %v2211
    %v2322 = vmul.f32 %v2216, %v2216
    %v2323 = vmul.f32 %v2221, %v2221
    %v2324 = vmul.f32 %v2226, %v2226
    %v2325 = vmul.f32 %v2231, %v2231
    %v2326 = vmul.f32 %v2236, %v2236
    %v2327 = vmul.f32 %v2241, %v2241
    %v2328 = vmul.f32 %v2246, %v2246
    %v2329 = vmul.f32 %v2251, %v2251
    %v2330 = vmul.f32 %v2256, %v2256
    %v2331 = vmul.f32 %v2261, %v2261
    %v2332 = vmul.f32 %v2266, %v2266
    %v2333 = vmul.f32 %v2271, %v2271
    %v2334 = vsel %vm840, %v2318, 0.0
    %v2335 = vsel %vm840, %v2319, 0.0
    %v2336 = vadd.f32 %v2334, %v2335
    %v2337 = vsel %vm840, %v2320, 0.0
    %v2338 = vadd.f32 %v2336, %v2337
    %v2339 = vsel %vm840, %v2321, 0.0
    %v2340 = vadd.f32 %v2338, %v2339
    %v2341 = vsel %vm840, %v2322, 0.0
    %v2342 = vadd.f32 %v2340, %v2341
    %v2343 = vsel %vm840, %v2323, 0.0
    %v2344 = vadd.f32 %v2342, %v2343
    %v2345 = vsel %vm840, %v2324, 0.0
    %v2346 = vadd.f32 %v2344, %v2345
    %v2347 = vsel %vm840, %v2325, 0.0
    %v2348 = vadd.f32 %v2346, %v2347
    %v2349 = vrot.slane %v2348, 4
    %v2350 = vadd.f32 %v2348, %v2349
    %v2351 = vrot.slane %v2350, 2
    %v2352 = vadd.f32 %v2350, %v2351
    %v2353 = vrot.slane %v2352, 1
    %v2354 = vadd.f32 %v2352, %v2353
    %v2355 = vsel %vm840, %v2326, 0.0
    %v2356 = vsel %vm840, %v2327, 0.0
    %v2357 = vadd.f32 %v2355, %v2356
    %v2358 = vsel %vm840, %v2328, 0.0
    %v2359 = vadd.f32 %v2357, %v2358
    %v2360 = vsel %vm840, %v2329, 0.0
    %v2361 = vadd.f32 %v2359, %v2360
    %v2362 = vsel %vm840, %v2330, 0.0
    %v2363 = vadd.f32 %v2361, %v2362
    %v2364 = vsel %vm840, %v2331, 0.0
    %v2365 = vadd.f32 %v2363, %v2364
    %v2366 = vsel %vm840, %v2332, 0.0
    %v2367 = vadd.f32 %v2365, %v2366
    %v2368 = vsel %vm840, %v2333, 0.0
    %v2369 = vadd.f32 %v2367, %v2368
    %v2370 = vrot.slane %v2369, 4
    %v2371 = vadd.f32 %v2369, %v2370
    %v2372 = vrot.slane %v2371, 2
    %v2373 = vadd.f32 %v2371, %v2372
    %v2374 = vrot.slane %v2373, 1
    %v2375 = vadd.f32 %v2373, %v2374
    %v2376 = vmul.f32 %v2354, 0.015625
    %v2377 = vmul.f32 %v2375, 0.015625
    %v2378 = vmul.f32 %v2316, %v2316
    %v2379 = vmul.f32 %v2317, %v2317
    %v2380 = vsub.f32 %v2376, %v2378
    %v2381 = vsub.f32 %v2377, %v2379
    %v2382 = vmax.f32 %v2380, 0.0
    %v2383 = vmax.f32 %v2381, 0.0
    %v2384 = vadd.f32 %v2382, 1e-05
    %v2385 = vadd.f32 %v2383, 1e-05
    %v2386 = vrsqrt.pop %v2384
    %v2387 = vrsqrt.pop %v2385
    %v2388 = vsub.f32 %v2196, %v2316
    %v2389 = vsub.f32 %v2201, %v2316
    %v2390 = vsub.f32 %v2206, %v2316
    %v2391 = vsub.f32 %v2211, %v2316
    %v2392 = vsub.f32 %v2216, %v2316
    %v2393 = vsub.f32 %v2221, %v2316
    %v2394 = vsub.f32 %v2226, %v2316
    %v2395 = vsub.f32 %v2231, %v2316
    %v2396 = vsub.f32 %v2236, %v2317
    %v2397 = vsub.f32 %v2241, %v2317
    %v2398 = vsub.f32 %v2246, %v2317
    %v2399 = vsub.f32 %v2251, %v2317
    %v2400 = vsub.f32 %v2256, %v2317
    %v2401 = vsub.f32 %v2261, %v2317
    %v2402 = vsub.f32 %v2266, %v2317
    %v2403 = vsub.f32 %v2271, %v2317
    %v2404 = vmul.f32 %v2388, %v2386
    %v2405 = vmul.f32 %v2389, %v2386
    %v2406 = vmul.f32 %v2390, %v2386
    %v2407 = vmul.f32 %v2391, %v2386
    %v2408 = vmul.f32 %v2392, %v2386
    %v2409 = vmul.f32 %v2393, %v2386
    %v2410 = vmul.f32 %v2394, %v2386
    %v2411 = vmul.f32 %v2395, %v2386
    %v2412 = vmul.f32 %v2396, %v2387
    %v2413 = vmul.f32 %v2397, %v2387
    %v2414 = vmul.f32 %v2398, %v2387
    %v2415 = vmul.f32 %v2399, %v2387
    %v2416 = vmul.f32 %v2400, %v2387
    %v2417 = vmul.f32 %v2401, %v2387
    %v2418 = vmul.f32 %v2402, %v2387
    %v2419 = vmul.f32 %v2403, %v2387
    %v2420 = vmax.f32 %v2404, 0.0
    %v2421 = vmax.f32 %v2405, 0.0
    %v2422 = vmax.f32 %v2406, 0.0
    %v2423 = vmax.f32 %v2407, 0.0
    %v2424 = vmax.f32 %v2408, 0.0
    %v2425 = vmax.f32 %v2409, 0.0
    %v2426 = vmax.f32 %v2410, 0.0
    %v2427 = vmax.f32 %v2411, 0.0
    %v2428 = vmax.f32 %v2412, 0.0
    %v2429 = vmax.f32 %v2413, 0.0
    %v2430 = vmax.f32 %v2414, 0.0
    %v2431 = vmax.f32 %v2415, 0.0
    %v2432 = vmax.f32 %v2416, 0.0
    %v2433 = vmax.f32 %v2417, 0.0
    %v2434 = vmax.f32 %v2418, 0.0
    %v2435 = vmax.f32 %v2419, 0.0
    %v2436 = vcombine.high %v2420, 0.0
    %v2438 = vunpack.c.l.s4 1983009808
    %v2439 = vunpack.c.0.s8 %v2438
    %v2440 = vlaneseq
    %v2441 = vshrl.u32 %v2440, 7
    %v2442 = vsub.s32 %v2439, %v2441
    %v2443 = vrot.slane %v2420, %v2442
    %v2445 = vunpack.c.l.s4 1983009808
    %v2446 = vunpack.c.0.s8 %v2445
    %v2447 = vlaneseq
    %v2448 = vshrl.u32 %v2447, 7
    %v2449 = vsub.s32 %v2446, %v2448
    %v2450 = vrot.slane %v2436, %v2449
    %v2451 = vcombine.high %v2428, 0.0
    %v2453 = vunpack.c.l.s4 1983009808
    %v2454 = vunpack.c.0.s8 %v2453
    %v2455 = vlaneseq
    %v2456 = vshrl.u32 %v2455, 7
    %v2457 = vsub.s32 %v2454, %v2456
    %v2458 = vrot.slane %v2428, %v2457
    %v2460 = vunpack.c.l.s4 1983009808
    %v2461 = vunpack.c.0.s8 %v2460
    %v2462 = vlaneseq
    %v2463 = vshrl.u32 %v2462, 7
    %v2464 = vsub.s32 %v2461, %v2463
    %v2465 = vrot.slane %v2451, %v2464
    %v2466 = vcombine.low %v2443, %v2458
    %v2467 = vcombine.high %v2443, %v2458
    %v2469 = vunpack.c.l.s4 1934713408
    %v2470 = vunpack.c.0.s8 %v2469
    %v2471 = vlaneseq
    %v2472 = vshrl.u32 %v2471, 7
    %v2473 = vsub.s32 %v2470, %v2472
    %v2474 = vrot.slane %v2466, %v2473
    %v2476 = vunpack.c.l.s4 1934713408
    %v2477 = vunpack.c.0.s8 %v2476
    %v2478 = vlaneseq
    %v2479 = vshrl.u32 %v2478, 7
    %v2480 = vsub.s32 %v2477, %v2479
    %v2481 = vrot.slane %v2467, %v2480
    %v2482 = vcombine.low %v2450, %v2465
    %v2483 = vcombine.high %v2450, %v2465
    %v2485 = vunpack.c.l.s4 1934713408
    %v2486 = vunpack.c.0.s8 %v2485
    %v2487 = vlaneseq
    %v2488 = vshrl.u32 %v2487, 7
    %v2489 = vsub.s32 %v2486, %v2488
    %v2490 = vrot.slane %v2482, %v2489
    %v2492 = vunpack.c.l.s4 1934713408
    %v2493 = vunpack.c.0.s8 %v2492
    %v2494 = vlaneseq
    %v2495 = vshrl.u32 %v2494, 7
    %v2496 = vsub.s32 %v2493, %v2495
    %v2497 = vrot.slane %v2483, %v2496
    %v2498 = vcombine.high %v2474, 0.0
    %v2499 = vcombine.high %v2481, 0.0
    %v2500 = vcombine.high %v2490, 0.0
    %v2501 = vcombine.high %v2497, 0.0
    %v2502 = vcombine.high %v2421, 0.0
    %v2504 = vunpack.c.l.s4 1983009808
    %v2505 = vunpack.c.0.s8 %v2504
    %v2506 = vlaneseq
    %v2507 = vshrl.u32 %v2506, 7
    %v2508 = vsub.s32 %v2505, %v2507
    %v2509 = vrot.slane %v2421, %v2508
    %v2511 = vunpack.c.l.s4 1983009808
    %v2512 = vunpack.c.0.s8 %v2511
    %v2513 = vlaneseq
    %v2514 = vshrl.u32 %v2513, 7
    %v2515 = vsub.s32 %v2512, %v2514
    %v2516 = vrot.slane %v2502, %v2515
    %v2517 = vcombine.high %v2429, 0.0
    %v2519 = vunpack.c.l.s4 1983009808
    %v2520 = vunpack.c.0.s8 %v2519
    %v2521 = vlaneseq
    %v2522 = vshrl.u32 %v2521, 7
    %v2523 = vsub.s32 %v2520, %v2522
    %v2524 = vrot.slane %v2429, %v2523
    %v2526 = vunpack.c.l.s4 1983009808
    %v2527 = vunpack.c.0.s8 %v2526
    %v2528 = vlaneseq
    %v2529 = vshrl.u32 %v2528, 7
    %v2530 = vsub.s32 %v2527, %v2529
    %v2531 = vrot.slane %v2517, %v2530
    %v2532 = vcombine.low %v2509, %v2524
    %v2533 = vcombine.high %v2509, %v2524
    %v2535 = vunpack.c.l.s4 1934713408
    %v2536 = vunpack.c.0.s8 %v2535
    %v2537 = vlaneseq
    %v2538 = vshrl.u32 %v2537, 7
    %v2539 = vsub.s32 %v2536, %v2538
    %v2540 = vrot.slane %v2532, %v2539
    %v2542 = vunpack.c.l.s4 1934713408
    %v2543 = vunpack.c.0.s8 %v2542
    %v2544 = vlaneseq
    %v2545 = vshrl.u32 %v2544, 7
    %v2546 = vsub.s32 %v2543, %v2545
    %v2547 = vrot.slane %v2533, %v2546
    %v2548 = vcombine.low %v2516, %v2531
    %v2549 = vcombine.high %v2516, %v2531
    %v2551 = vunpack.c.l.s4 1934713408
    %v2552 = vunpack.c.0.s8 %v2551
    %v2553 = vlaneseq
    %v2554 = vshrl.u32 %v2553, 7
    %v2555 = vsub.s32 %v2552, %v2554
    %v2556 = vrot.slane %v2548, %v2555
    %v2558 = vunpack.c.l.s4 1934713408
    %v2559 = vunpack.c.0.s8 %v2558
    %v2560 = vlaneseq
    %v2561 = vshrl.u32 %v2560, 7
    %v2562 = vsub.s32 %v2559, %v2561
    %v2563 = vrot.slane %v2549, %v2562
    %v2564 = vcombine.high %v2540, 0.0
    %v2565 = vcombine.high %v2547, 0.0
    %v2566 = vcombine.high %v2556, 0.0
    %v2567 = vcombine.high %v2563, 0.0
    %v2568 = vcombine.high %v2422, 0.0
    %v2570 = vunpack.c.l.s4 1983009808
    %v2571 = vunpack.c.0.s8 %v2570
    %v2572 = vlaneseq
    %v2573 = vshrl.u32 %v2572, 7
    %v2574 = vsub.s32 %v2571, %v2573
    %v2575 = vrot.slane %v2422, %v2574
    %v2577 = vunpack.c.l.s4 1983009808
    %v2578 = vunpack.c.0.s8 %v2577
    %v2579 = vlaneseq
    %v2580 = vshrl.u32 %v2579, 7
    %v2581 = vsub.s32 %v2578, %v2580
    %v2582 = vrot.slane %v2568, %v2581
    %v2583 = vcombine.high %v2430, 0.0
    %v2585 = vunpack.c.l.s4 1983009808
    %v2586 = vunpack.c.0.s8 %v2585
    %v2587 = vlaneseq
    %v2588 = vshrl.u32 %v2587, 7
    %v2589 = vsub.s32 %v2586, %v2588
    %v2590 = vrot.slane %v2430, %v2589
    %v2592 = vunpack.c.l.s4 1983009808
    %v2593 = vunpack.c.0.s8 %v2592
    %v2594 = vlaneseq
    %v2595 = vshrl.u32 %v2594, 7
    %v2596 = vsub.s32 %v2593, %v2595
    %v2597 = vrot.slane %v2583, %v2596
    %v2598 = vcombine.low %v2575, %v2590
    %v2599 = vcombine.high %v2575, %v2590
    %v2601 = vunpack.c.l.s4 1934713408
    %v2602 = vunpack.c.0.s8 %v2601
    %v2603 = vlaneseq
    %v2604 = vshrl.u32 %v2603, 7
    %v2605 = vsub.s32 %v2602, %v2604
    %v2606 = vrot.slane %v2598, %v2605
    %v2608 = vunpack.c.l.s4 1934713408
    %v2609 = vunpack.c.0.s8 %v2608
    %v2610 = vlaneseq
    %v2611 = vshrl.u32 %v2610, 7
    %v2612 = vsub.s32 %v2609, %v2611
    %v2613 = vrot.slane %v2599, %v2612
    %v2614 = vcombine.low %v2582, %v2597
    %v2615 = vcombine.high %v2582, %v2597
    %v2617 = vunpack.c.l.s4 1934713408
    %v2618 = vunpack.c.0.s8 %v2617
    %v2619 = vlaneseq
    %v2620 = vshrl.u32 %v2619, 7
    %v2621 = vsub.s32 %v2618, %v2620
    %v2622 = vrot.slane %v2614, %v2621
    %v2624 = vunpack.c.l.s4 1934713408
    %v2625 = vunpack.c.0.s8 %v2624
    %v2626 = vlaneseq
    %v2627 = vshrl.u32 %v2626, 7
    %v2628 = vsub.s32 %v2625, %v2627
    %v2629 = vrot.slane %v2615, %v2628
    %v2630 = vcombine.high %v2606, 0.0
    %v2631 = vcombine.high %v2613, 0.0
    %v2632 = vcombine.high %v2622, 0.0
    %v2633 = vcombine.high %v2629, 0.0
    %v2634 = vcombine.high %v2423, 0.0
    %v2636 = vunpack.c.l.s4 1983009808
    %v2637 = vunpack.c.0.s8 %v2636
    %v2638 = vlaneseq
    %v2639 = vshrl.u32 %v2638, 7
    %v2640 = vsub.s32 %v2637, %v2639
    %v2641 = vrot.slane %v2423, %v2640
    %v2643 = vunpack.c.l.s4 1983009808
    %v2644 = vunpack.c.0.s8 %v2643
    %v2645 = vlaneseq
    %v2646 = vshrl.u32 %v2645, 7
    %v2647 = vsub.s32 %v2644, %v2646
    %v2648 = vrot.slane %v2634, %v2647
    %v2649 = vcombine.high %v2431, 0.0
    %v2651 = vunpack.c.l.s4 1983009808
    %v2652 = vunpack.c.0.s8 %v2651
    %v2653 = vlaneseq
    %v2654 = vshrl.u32 %v2653, 7
    %v2655 = vsub.s32 %v2652, %v2654
    %v2656 = vrot.slane %v2431, %v2655
    %v2658 = vunpack.c.l.s4 1983009808
    %v2659 = vunpack.c.0.s8 %v2658
    %v2660 = vlaneseq
    %v2661 = vshrl.u32 %v2660, 7
    %v2662 = vsub.s32 %v2659, %v2661
    %v2663 = vrot.slane %v2649, %v2662
    %v2664 = vcombine.low %v2641, %v2656
    %v2665 = vcombine.high %v2641, %v2656
    %v2667 = vunpack.c.l.s4 1934713408
    %v2668 = vunpack.c.0.s8 %v2667
    %v2669 = vlaneseq
    %v2670 = vshrl.u32 %v2669, 7
    %v2671 = vsub.s32 %v2668, %v2670
    %v2672 = vrot.slane %v2664, %v2671
    %v2674 = vunpack.c.l.s4 1934713408
    %v2675 = vunpack.c.0.s8 %v2674
    %v2676 = vlaneseq
    %v2677 = vshrl.u32 %v2676, 7
    %v2678 = vsub.s32 %v2675, %v2677
    %v2679 = vrot.slane %v2665, %v2678
    %v2680 = vcombine.low %v2648, %v2663
    %v2681 = vcombine.high %v2648, %v2663
    %v2683 = vunpack.c.l.s4 1934713408
    %v2684 = vunpack.c.0.s8 %v2683
    %v2685 = vlaneseq
    %v2686 = vshrl.u32 %v2685, 7
    %v2687 = vsub.s32 %v2684, %v2686
    %v2688 = vrot.slane %v2680, %v2687
    %v2690 = vunpack.c.l.s4 1934713408
    %v2691 = vunpack.c.0.s8 %v2690
    %v2692 = vlaneseq
    %v2693 = vshrl.u32 %v2692, 7
    %v2694 = vsub.s32 %v2691, %v2693
    %v2695 = vrot.slane %v2681, %v2694
    %v2696 = vcombine.high %v2672, 0.0
    %v2697 = vcombine.high %v2679, 0.0
    %v2698 = vcombine.high %v2688, 0.0
    %v2699 = vcombine.high %v2695, 0.0
    %v2700 = vcombine.high %v2424, 0.0
    %v2702 = vunpack.c.l.s4 1983009808
    %v2703 = vunpack.c.0.s8 %v2702
    %v2704 = vlaneseq
    %v2705 = vshrl.u32 %v2704, 7
    %v2706 = vsub.s32 %v2703, %v2705
    %v2707 = vrot.slane %v2424, %v2706
    %v2709 = vunpack.c.l.s4 1983009808
    %v2710 = vunpack.c.0.s8 %v2709
    %v2711 = vlaneseq
    %v2712 = vshrl.u32 %v2711, 7
    %v2713 = vsub.s32 %v2710, %v2712
    %v2714 = vrot.slane %v2700, %v2713
    %v2715 = vcombine.high %v2432, 0.0
    %v2717 = vunpack.c.l.s4 1983009808
    %v2718 = vunpack.c.0.s8 %v2717
    %v2719 = vlaneseq
    %v2720 = vshrl.u32 %v2719, 7
    %v2721 = vsub.s32 %v2718, %v2720
    %v2722 = vrot.slane %v2432, %v2721
    %v2724 = vunpack.c.l.s4 1983009808
    %v2725 = vunpack.c.0.s8 %v2724
    %v2726 = vlaneseq
    %v2727 = vshrl.u32 %v2726, 7
    %v2728 = vsub.s32 %v2725, %v2727
    %v2729 = vrot.slane %v2715, %v2728
    %v2730 = vcombine.low %v2707, %v2722
    %v2731 = vcombine.high %v2707, %v2722
    %v2733 = vunpack.c.l.s4 1934713408
    %v2734 = vunpack.c.0.s8 %v2733
    %v2735 = vlaneseq
    %v2736 = vshrl.u32 %v2735, 7
    %v2737 = vsub.s32 %v2734, %v2736
    %v2738 = vrot.slane %v2730, %v2737
    %v2740 = vunpack.c.l.s4 1934713408
    %v2741 = vunpack.c.0.s8 %v2740
    %v2742 = vlaneseq
    %v2743 = vshrl.u32 %v2742, 7
    %v2744 = vsub.s32 %v2741, %v2743
    %v2745 = vrot.slane %v2731, %v2744
    %v2746 = vcombine.low %v2714, %v2729
    %v2747 = vcombine.high %v2714, %v2729
    %v2749 = vunpack.c.l.s4 1934713408
    %v2750 = vunpack.c.0.s8 %v2749
    %v2751 = vlaneseq
    %v2752 = vshrl.u32 %v2751, 7
    %v2753 = vsub.s32 %v2750, %v2752
    %v2754 = vrot.slane %v2746, %v2753
    %v2756 = vunpack.c.l.s4 1934713408
    %v2757 = vunpack.c.0.s8 %v2756
    %v2758 = vlaneseq
    %v2759 = vshrl.u32 %v2758, 7
    %v2760 = vsub.s32 %v2757, %v2759
    %v2761 = vrot.slane %v2747, %v2760
    %v2762 = vcombine.high %v2738, 0.0
    %v2763 = vcombine.high %v2745, 0.0
    %v2764 = vcombine.high %v2754, 0.0
    %v2765 = vcombine.high %v2761, 0.0
    %v2766 = vcombine.high %v2425, 0.0
    %v2768 = vunpack.c.l.s4 1983009808
    %v2769 = vunpack.c.0.s8 %v2768
    %v2770 = vlaneseq
    %v2771 = vshrl.u32 %v2770, 7
    %v2772 = vsub.s32 %v2769, %v2771
    %v2773 = vrot.slane %v2425, %v2772
    %v2775 = vunpack.c.l.s4 1983009808
    %v2776 = vunpack.c.0.s8 %v2775
    %v2777 = vlaneseq
    %v2778 = vshrl.u32 %v2777, 7
    %v2779 = vsub.s32 %v2776, %v2778
    %v2780 = vrot.slane %v2766, %v2779
    %v2781 = vcombine.high %v2433, 0.0
    %v2783 = vunpack.c.l.s4 1983009808
    %v2784 = vunpack.c.0.s8 %v2783
    %v2785 = vlaneseq
    %v2786 = vshrl.u32 %v2785, 7
    %v2787 = vsub.s32 %v2784, %v2786
    %v2788 = vrot.slane %v2433, %v2787
    %v2790 = vunpack.c.l.s4 1983009808
    %v2791 = vunpack.c.0.s8 %v2790
    %v2792 = vlaneseq
    %v2793 = vshrl.u32 %v2792, 7
    %v2794 = vsub.s32 %v2791, %v2793
    %v2795 = vrot.slane %v2781, %v2794
    %v2796 = vcombine.low %v2773, %v2788
    %v2797 = vcombine.high %v2773, %v2788
    %v2799 = vunpack.c.l.s4 1934713408
    %v2800 = vunpack.c.0.s8 %v2799
    %v2801 = vlaneseq
    %v2802 = vshrl.u32 %v2801, 7
    %v2803 = vsub.s32 %v2800, %v2802
    %v2804 = vrot.slane %v2796, %v2803
    %v2806 = vunpack.c.l.s4 1934713408
    %v2807 = vunpack.c.0.s8 %v2806
    %v2808 = vlaneseq
    %v2809 = vshrl.u32 %v2808, 7
    %v2810 = vsub.s32 %v2807, %v2809
    %v2811 = vrot.slane %v2797, %v2810
    %v2812 = vcombine.low %v2780, %v2795
    %v2813 = vcombine.high %v2780, %v2795
    %v2815 = vunpack.c.l.s4 1934713408
    %v2816 = vunpack.c.0.s8 %v2815
    %v2817 = vlaneseq
    %v2818 = vshrl.u32 %v2817, 7
    %v2819 = vsub.s32 %v2816, %v2818
    %v2820 = vrot.slane %v2812, %v2819
    %v2822 = vunpack.c.l.s4 1934713408
    %v2823 = vunpack.c.0.s8 %v2822
    %v2824 = vlaneseq
    %v2825 = vshrl.u32 %v2824, 7
    %v2826 = vsub.s32 %v2823, %v2825
    %v2827 = vrot.slane %v2813, %v2826
    %v2828 = vcombine.high %v2804, 0.0
    %v2829 = vcombine.high %v2811, 0.0
    %v2830 = vcombine.high %v2820, 0.0
    %v2831 = vcombine.high %v2827, 0.0
    %v2832 = vcombine.high %v2426, 0.0
    %v2834 = vunpack.c.l.s4 1983009808
    %v2835 = vunpack.c.0.s8 %v2834
    %v2836 = vlaneseq
    %v2837 = vshrl.u32 %v2836, 7
    %v2838 = vsub.s32 %v2835, %v2837
    %v2839 = vrot.slane %v2426, %v2838
    %v2841 = vunpack.c.l.s4 1983009808
    %v2842 = vunpack.c.0.s8 %v2841
    %v2843 = vlaneseq
    %v2844 = vshrl.u32 %v2843, 7
    %v2845 = vsub.s32 %v2842, %v2844
    %v2846 = vrot.slane %v2832, %v2845
    %v2847 = vcombine.high %v2434, 0.0
    %v2849 = vunpack.c.l.s4 1983009808
    %v2850 = vunpack.c.0.s8 %v2849
    %v2851 = vlaneseq
    %v2852 = vshrl.u32 %v2851, 7
    %v2853 = vsub.s32 %v2850, %v2852
    %v2854 = vrot.slane %v2434, %v2853
    %v2856 = vunpack.c.l.s4 1983009808
    %v2857 = vunpack.c.0.s8 %v2856
    %v2858 = vlaneseq
    %v2859 = vshrl.u32 %v2858, 7
    %v2860 = vsub.s32 %v2857, %v2859
    %v2861 = vrot.slane %v2847, %v2860
    %v2862 = vcombine.low %v2839, %v2854
    %v2863 = vcombine.high %v2839, %v2854
    %v2865 = vunpack.c.l.s4 1934713408
    %v2866 = vunpack.c.0.s8 %v2865
    %v2867 = vlaneseq
    %v2868 = vshrl.u32 %v2867, 7
    %v2869 = vsub.s32 %v2866, %v2868
    %v2870 = vrot.slane %v2862, %v2869
    %v2872 = vunpack.c.l.s4 1934713408
    %v2873 = vunpack.c.0.s8 %v2872
    %v2874 = vlaneseq
    %v2875 = vshrl.u32 %v2874, 7
    %v2876 = vsub.s32 %v2873, %v2875
    %v2877 = vrot.slane %v2863, %v2876
    %v2878 = vcombine.low %v2846, %v2861
    %v2879 = vcombine.high %v2846, %v2861
    %v2881 = vunpack.c.l.s4 1934713408
    %v2882 = vunpack.c.0.s8 %v2881
    %v2883 = vlaneseq
    %v2884 = vshrl.u32 %v2883, 7
    %v2885 = vsub.s32 %v2882, %v2884
    %v2886 = vrot.slane %v2878, %v2885
    %v2888 = vunpack.c.l.s4 1934713408
    %v2889 = vunpack.c.0.s8 %v2888
    %v2890 = vlaneseq
    %v2891 = vshrl.u32 %v2890, 7
    %v2892 = vsub.s32 %v2889, %v2891
    %v2893 = vrot.slane %v2879, %v2892
    %v2894 = vcombine.high %v2870, 0.0
    %v2895 = vcombine.high %v2877, 0.0
    %v2896 = vcombine.high %v2886, 0.0
    %v2897 = vcombine.high %v2893, 0.0
    %v2898 = vcombine.high %v2427, 0.0
    %v2900 = vunpack.c.l.s4 1983009808
    %v2901 = vunpack.c.0.s8 %v2900
    %v2902 = vlaneseq
    %v2903 = vshrl.u32 %v2902, 7
    %v2904 = vsub.s32 %v2901, %v2903
    %v2905 = vrot.slane %v2427, %v2904
    %v2907 = vunpack.c.l.s4 1983009808
    %v2908 = vunpack.c.0.s8 %v2907
    %v2909 = vlaneseq
    %v2910 = vshrl.u32 %v2909, 7
    %v2911 = vsub.s32 %v2908, %v2910
    %v2912 = vrot.slane %v2898, %v2911
    %v2913 = vcombine.high %v2435, 0.0
    %v2915 = vunpack.c.l.s4 1983009808
    %v2916 = vunpack.c.0.s8 %v2915
    %v2917 = vlaneseq
    %v2918 = vshrl.u32 %v2917, 7
    %v2919 = vsub.s32 %v2916, %v2918
    %v2920 = vrot.slane %v2435, %v2919
    %v2922 = vunpack.c.l.s4 1983009808
    %v2923 = vunpack.c.0.s8 %v2922
    %v2924 = vlaneseq
    %v2925 = vshrl.u32 %v2924, 7
    %v2926 = vsub.s32 %v2923, %v2925
    %v2927 = vrot.slane %v2913, %v2926
    %v2928 = vcombine.low %v2905, %v2920
    %v2929 = vcombine.high %v2905, %v2920
    %v2931 = vunpack.c.l.s4 1934713408
    %v2932 = vunpack.c.0.s8 %v2931
    %v2933 = vlaneseq
    %v2934 = vshrl.u32 %v2933, 7
    %v2935 = vsub.s32 %v2932, %v2934
    %v2936 = vrot.slane %v2928, %v2935
    %v2938 = vunpack.c.l.s4 1934713408
    %v2939 = vunpack.c.0.s8 %v2938
    %v2940 = vlaneseq
    %v2941 = vshrl.u32 %v2940, 7
    %v2942 = vsub.s32 %v2939, %v2941
    %v2943 = vrot.slane %v2929, %v2942
    %v2944 = vcombine.low %v2912, %v2927
    %v2945 = vcombine.high %v2912, %v2927
    %v2947 = vunpack.c.l.s4 1934713408
    %v2948 = vunpack.c.0.s8 %v2947
    %v2949 = vlaneseq
    %v2950 = vshrl.u32 %v2949, 7
    %v2951 = vsub.s32 %v2948, %v2950
    %v2952 = vrot.slane %v2944, %v2951
    %v2954 = vunpack.c.l.s4 1934713408
    %v2955 = vunpack.c.0.s8 %v2954
    %v2956 = vlaneseq
    %v2957 = vshrl.u32 %v2956, 7
    %v2958 = vsub.s32 %v2955, %v2957
    %v2959 = vrot.slane %v2945, %v2958
    %v2960 = vcombine.high %v2936, 0.0
    %v2961 = vcombine.high %v2943, 0.0
    %v2962 = vcombine.high %v2952, 0.0
    %v2963 = vcombine.high %v2959, 0.0
    %2965 = vrot.lane.b32.xlu0 %v2498, 8
    %v2966 = vpop.permute.xlu0 %2965
    %2969 = vrot.lane.b32.xlu0 %v2481, 16
    %v2970 = vpop.permute.xlu0 %2969
    %2973 = vrot.lane.b32.xlu0 %v2499, 24
    %v2974 = vpop.permute.xlu0 %2973
    %2977 = vrot.lane.b32.xlu0 %v2490, 32
    %v2978 = vpop.permute.xlu0 %2977
    %2981 = vrot.lane.b32.xlu0 %v2500, 40
    %v2982 = vpop.permute.xlu0 %2981
    %2985 = vrot.lane.b32.xlu0 %v2497, 48
    %v2986 = vpop.permute.xlu0 %2985
    %2989 = vrot.lane.b32.xlu0 %v2501, 56
    %v2990 = vpop.permute.xlu0 %2989
    %2993 = vrot.lane.b32.xlu0 %v2540, 64
    %v2994 = vpop.permute.xlu0 %2993
    %2997 = vrot.lane.b32.xlu0 %v2564, 72
    %v2998 = vpop.permute.xlu0 %2997
    %3001 = vrot.lane.b32.xlu0 %v2547, 80
    %v3002 = vpop.permute.xlu0 %3001
    %3005 = vrot.lane.b32.xlu0 %v2565, 88
    %v3006 = vpop.permute.xlu0 %3005
    %3009 = vrot.lane.b32.xlu0 %v2556, 96
    %v3010 = vpop.permute.xlu0 %3009
    %3013 = vrot.lane.b32.xlu0 %v2566, 104
    %v3014 = vpop.permute.xlu0 %3013
    %3017 = vrot.lane.b32.xlu0 %v2563, 112
    %v3018 = vpop.permute.xlu0 %3017
    %3021 = vrot.lane.b32.xlu0 %v2567, 120
    %v3022 = vpop.permute.xlu0 %3021
    %3025 = vrot.lane.b32.xlu0 %v2630, 8
    %v3026 = vpop.permute.xlu0 %3025
    %3029 = vrot.lane.b32.xlu0 %v2613, 16
    %v3030 = vpop.permute.xlu0 %3029
    %3033 = vrot.lane.b32.xlu0 %v2631, 24
    %v3034 = vpop.permute.xlu0 %3033
    %3037 = vrot.lane.b32.xlu0 %v2622, 32
    %v3038 = vpop.permute.xlu0 %3037
    %3041 = vrot.lane.b32.xlu0 %v2632, 40
    %v3042 = vpop.permute.xlu0 %3041
    %3045 = vrot.lane.b32.xlu0 %v2629, 48
    %v3046 = vpop.permute.xlu0 %3045
    %3049 = vrot.lane.b32.xlu0 %v2633, 56
    %v3050 = vpop.permute.xlu0 %3049
    %3053 = vrot.lane.b32.xlu0 %v2672, 64
    %v3054 = vpop.permute.xlu0 %3053
    %3057 = vrot.lane.b32.xlu0 %v2696, 72
    %v3058 = vpop.permute.xlu0 %3057
    %3061 = vrot.lane.b32.xlu0 %v2679, 80
    %v3062 = vpop.permute.xlu0 %3061
    %3065 = vrot.lane.b32.xlu0 %v2697, 88
    %v3066 = vpop.permute.xlu0 %3065
    %3069 = vrot.lane.b32.xlu0 %v2688, 96
    %v3070 = vpop.permute.xlu0 %3069
    %3073 = vrot.lane.b32.xlu0 %v2698, 104
    %v3074 = vpop.permute.xlu0 %3073
    %3077 = vrot.lane.b32.xlu0 %v2695, 112
    %v3078 = vpop.permute.xlu0 %3077
    %3081 = vrot.lane.b32.xlu0 %v2699, 120
    %v3082 = vpop.permute.xlu0 %3081
    %3085 = vrot.lane.b32.xlu0 %v2762, 8
    %v3086 = vpop.permute.xlu0 %3085
    %3089 = vrot.lane.b32.xlu0 %v2745, 16
    %v3090 = vpop.permute.xlu0 %3089
    %3093 = vrot.lane.b32.xlu0 %v2763, 24
    %v3094 = vpop.permute.xlu0 %3093
    %3097 = vrot.lane.b32.xlu0 %v2754, 32
    %v3098 = vpop.permute.xlu0 %3097
    %3101 = vrot.lane.b32.xlu0 %v2764, 40
    %v3102 = vpop.permute.xlu0 %3101
    %3105 = vrot.lane.b32.xlu0 %v2761, 48
    %v3106 = vpop.permute.xlu0 %3105
    %3109 = vrot.lane.b32.xlu0 %v2765, 56
    %v3110 = vpop.permute.xlu0 %3109
    %3113 = vrot.lane.b32.xlu0 %v2804, 64
    %v3114 = vpop.permute.xlu0 %3113
    %3117 = vrot.lane.b32.xlu0 %v2828, 72
    %v3118 = vpop.permute.xlu0 %3117
    %3121 = vrot.lane.b32.xlu0 %v2811, 80
    %v3122 = vpop.permute.xlu0 %3121
    %3125 = vrot.lane.b32.xlu0 %v2829, 88
    %v3126 = vpop.permute.xlu0 %3125
    %3129 = vrot.lane.b32.xlu0 %v2820, 96
    %v3130 = vpop.permute.xlu0 %3129
    %3133 = vrot.lane.b32.xlu0 %v2830, 104
    %v3134 = vpop.permute.xlu0 %3133
    %3137 = vrot.lane.b32.xlu0 %v2827, 112
    %v3138 = vpop.permute.xlu0 %3137
    %3141 = vrot.lane.b32.xlu0 %v2831, 120
    %v3142 = vpop.permute.xlu0 %3141
    %3145 = vrot.lane.b32.xlu0 %v2894, 8
    %v3146 = vpop.permute.xlu0 %3145
    %3149 = vrot.lane.b32.xlu0 %v2877, 16
    %v3150 = vpop.permute.xlu0 %3149
    %3153 = vrot.lane.b32.xlu0 %v2895, 24
    %v3154 = vpop.permute.xlu0 %3153
    %3157 = vrot.lane.b32.xlu0 %v2886, 32
    %v3158 = vpop.permute.xlu0 %3157
    %3161 = vrot.lane.b32.xlu0 %v2896, 40
    %v3162 = vpop.permute.xlu0 %3161
    %3165 = vrot.lane.b32.xlu0 %v2893, 48
    %v3166 = vpop.permute.xlu0 %3165
    %3169 = vrot.lane.b32.xlu0 %v2897, 56
    %v3170 = vpop.permute.xlu0 %3169
    %3173 = vrot.lane.b32.xlu0 %v2936, 64
    %v3174 = vpop.permute.xlu0 %3173
    %3177 = vrot.lane.b32.xlu0 %v2960, 72
    %v3178 = vpop.permute.xlu0 %3177
    %3181 = vrot.lane.b32.xlu0 %v2943, 80
    %v3182 = vpop.permute.xlu0 %3181
    %3185 = vrot.lane.b32.xlu0 %v2961, 88
    %v3186 = vpop.permute.xlu0 %3185
    %3189 = vrot.lane.b32.xlu0 %v2952, 96
    %v3190 = vpop.permute.xlu0 %3189
    %3193 = vrot.lane.b32.xlu0 %v2962, 104
    %v3194 = vpop.permute.xlu0 %3193
    %3197 = vrot.lane.b32.xlu0 %v2959, 112
    %v3198 = vpop.permute.xlu0 %3197
    %3201 = vrot.lane.b32.xlu0 %v2963, 120
    %v3202 = vpop.permute.xlu0 %3201
    %v3204 = vsel %vm840, %v2474, %v2966
    %v3205 = vsel %vm872, %v3204, %v2970
    %v3206 = vsel %vm906, %v3205, %v2974
    %v3207 = vsel %vm940, %v3206, %v2978
    %v3208 = vsel %vm2012, %v3207, %v2982
    %v3209 = vsel %vm2029, %v3208, %v2986
    %v3210 = vsel %vm2046, %v3209, %v2990
    %v3211 = vsel %vm2063, %v3210, %v2994
    %v3212 = vsel %vm2080, %v3211, %v2998
    %vm3213 = vcmask 654336
    %v3214 = vsel %vm3213, %v3212, %v3002
    %vm3215 = vcmask 719872
    %v3216 = vsel %vm3215, %v3214, %v3006
    %vm3217 = vcmask 785408
    %v3218 = vsel %vm3217, %v3216, %v3010
    %vm3219 = vcmask 850944
    %v3220 = vsel %vm3219, %v3218, %v3014
    %vm3221 = vcmask 916480
    %v3222 = vsel %vm3221, %v3220, %v3018
    %vm3223 = vcmask 982016
    %v3224 = vsel %vm3223, %v3222, %v3022
    %v3225 = vsel %vm840, %v2606, %v3026
    %v3226 = vsel %vm872, %v3225, %v3030
    %v3227 = vsel %vm906, %v3226, %v3034
    %v3228 = vsel %vm940, %v3227, %v3038
    %v3229 = vsel %vm2012, %v3228, %v3042
    %v3230 = vsel %vm2029, %v3229, %v3046
    %v3231 = vsel %vm2046, %v3230, %v3050
    %v3232 = vsel %vm2063, %v3231, %v3054
    %v3233 = vsel %vm2080, %v3232, %v3058
    %v3234 = vsel %vm3213, %v3233, %v3062
    %v3235 = vsel %vm3215, %v3234, %v3066
    %v3236 = vsel %vm3217, %v3235, %v3070
    %v3237 = vsel %vm3219, %v3236, %v3074
    %v3238 = vsel %vm3221, %v3237, %v3078
    %v3239 = vsel %vm3223, %v3238, %v3082
    %v3240 = vsel %vm840, %v2738, %v3086
    %v3241 = vsel %vm872, %v3240, %v3090
    %v3242 = vsel %vm906, %v3241, %v3094
    %v3243 = vsel %vm940, %v3242, %v3098
    %v3244 = vsel %vm2012, %v3243, %v3102
    %v3245 = vsel %vm2029, %v3244, %v3106
    %v3246 = vsel %vm2046, %v3245, %v3110
    %v3247 = vsel %vm2063, %v3246, %v3114
    %v3248 = vsel %vm2080, %v3247, %v3118
    %v3249 = vsel %vm3213, %v3248, %v3122
    %v3250 = vsel %vm3215, %v3249, %v3126
    %v3251 = vsel %vm3217, %v3250, %v3130
    %v3252 = vsel %vm3219, %v3251, %v3134
    %v3253 = vsel %vm3221, %v3252, %v3138
    %v3254 = vsel %vm3223, %v3253, %v3142
    %v3255 = vsel %vm840, %v2870, %v3146
    %v3256 = vsel %vm872, %v3255, %v3150
    %v3257 = vsel %vm906, %v3256, %v3154
    %v3258 = vsel %vm940, %v3257, %v3158
    %v3259 = vsel %vm2012, %v3258, %v3162
    %v3260 = vsel %vm2029, %v3259, %v3166
    %v3261 = vsel %vm2046, %v3260, %v3170
    %v3262 = vsel %vm2063, %v3261, %v3174
    %v3263 = vsel %vm2080, %v3262, %v3178
    %v3264 = vsel %vm3213, %v3263, %v3182
    %v3265 = vsel %vm3215, %v3264, %v3186
    %v3266 = vsel %vm3217, %v3265, %v3190
    %v3267 = vsel %vm3219, %v3266, %v3194
    %v3268 = vsel %vm3221, %v3267, %v3198
    %v3269 = vsel %vm3223, %v3268, %v3202
    %v3274 = vcombine.low %v3224, %v3239
    %v3275 = vcombine.low %v3254, %v3269
    %v3277 = vunpack.c.l.s4 1983009808
    %v3278 = vunpack.c.0.s8 %v3277
    %v3279 = vlaneseq
    %v3280 = vshrl.u32 %v3279, 7
    %v3281 = vsub.s32 %v3278, %v3280
    %v3282 = vrot.slane %v3274, %v3281
    %v3284 = vunpack.c.l.s4 1983009808
    %v3285 = vunpack.c.0.s8 %v3284
    %v3286 = vlaneseq
    %v3287 = vshrl.u32 %v3286, 7
    %v3288 = vsub.s32 %v3285, %v3287
    %v3289 = vrot.slane %v3275, %v3288
    %v3290 = vcombine.low %v3282, %v3289
    %3292 = vst [vmem:[#allocation2] sm:$0xff] %v3290
    // Predicated region
    $region14: #{tpu_custom_call.1} parent=1 // pred_check
      _
    $region15: #{tpu_custom_call.1} parent=1 // pred_check_branch
      %3294 = sbr.rel (0) target = $region17
    $region16: #{tpu_custom_call.1} parent=1 // pred_region
      %s3296 = ssub.s32 128, 128
      %3297 = vsyncadd [#allocation3], %s3296
      %s3299 = sshll.u32 [#allocation2], 4
      %s3300 = int_to_ptr.vmem [resolvable:$true] %s3299
      %3302 = dma.vmem_to_hbm [thread:$0]  %s3300, 128, %s3, [#allocation3]
    $region17: #{tpu_custom_call.1} parent=1 // pred_fallthru
      _
    // Predicated region
    $region18: #{tpu_custom_call.1} parent=1 // pred_check
      _
    $region19: #{tpu_custom_call.1} parent=1 // pred_check_branch
      %3304 = sbr.rel (0) target = $region21
    $region20: #{tpu_custom_call.1} parent=1 // pred_region
      %3305 = dma.done [#allocation3], 128
    $region21: #{tpu_custom_call.1} parent=1 // pred_fallthru
      _
    %3306 = vsyncpa [#allocation3], 1

</llo_original>
